<compile_context>
chip_gen: v6e
topology: v6e:2x2x1
jax: 0.10.0
libtpu: 0.0.40
codegen_flags: <defaults>
</compile_context>

<pallas_src>
import functools

import jax
import jax.numpy as jnp
from jax.experimental import pallas as pl
from jax.experimental.pallas import tpu as pltpu


# ---------------------------------------------------------------------------
# K1 / K3: row-tiled GEMM + bias (embarrassingly parallel over row tiles)
# ---------------------------------------------------------------------------
def _linear_kernel(x_ref, w_ref, b_ref, o_ref):
    o_ref[...] = (
        jnp.dot(x_ref[...], w_ref[...], preferred_element_type=jnp.float32)
        + b_ref[...]
    ).astype(o_ref.dtype)


def _linear(x2d, w, b, *, row_tile=128):
    """(R, K) @ (K, N) + (1, N) -> (R, N); rows padded to a multiple of row_tile."""
    R, K = x2d.shape
    N = w.shape[1]
    r_pad = pl.cdiv(R, row_tile) * row_tile
    if r_pad != R:
        x2d = jnp.pad(x2d, ((0, r_pad - R), (0, 0)))
    out = pl.pallas_call(
        _linear_kernel,
        out_shape=jax.ShapeDtypeStruct((r_pad, N), jnp.float32),
        grid_spec=pltpu.PrefetchScalarGridSpec(
            num_scalar_prefetch=0,
            grid=(r_pad // row_tile,),
            in_specs=[
                pl.BlockSpec((row_tile, K), lambda r: (r, 0)),
                pl.BlockSpec((K, N), lambda r: (0, 0)),   # weight (constant block)
                pl.BlockSpec((1, N), lambda r: (0, 0)),   # bias   (constant block)
            ],
            out_specs=pl.BlockSpec((row_tile, N), lambda r: (r, 0)),
        ),
        compiler_params=pltpu.CompilerParams(
            dimension_semantics=("parallel",)),
    )(x2d, w, b)
    return out[:R] if r_pad != R else out


# ---------------------------------------------------------------------------
# K2: the serial LSTM recurrence, TT timesteps per grid step
# ---------------------------------------------------------------------------
def _lstm_recurrence_kernel(xg_ref, whh_ref, h_out_ref, h_sc, c_sc):
    # grid = (batch_blocks, time_blocks); time is innermost and sequential,
    # so resetting h/c at time-block 0 is correct for every batch block.
    @pl.when(pl.program_id(1) == 0)
    def _():
        h_sc[...] = jnp.zeros_like(h_sc)
        c_sc[...] = jnp.zeros_like(c_sc)

    H = h_sc.shape[-1]
    TT = xg_ref.shape[0]
    whh = whh_ref[...]                       # (H, 4H); hoisted out of the loop

    def step(tt, carry):
        h, c = carry
        # Serial critical path: one (TB,H)@(H,4H) matmul + gate math per step.
        # The input projection (and its bias) was precomputed into xg.
        gates = xg_ref[tt] + jnp.dot(h, whh, preferred_element_type=jnp.float32)
        # PyTorch gate order [i, f, g, o]
        i_g = jax.nn.sigmoid(gates[:, 0 * H:1 * H])
        f_g = jax.nn.sigmoid(gates[:, 1 * H:2 * H])
        g_g = jnp.tanh(gates[:, 2 * H:3 * H])
        o_g = jax.nn.sigmoid(gates[:, 3 * H:4 * H])
        c_new = f_g * c + i_g * g_g
        h_new = o_g * jnp.tanh(c_new)
        h_out_ref[tt] = h_new                # hidden state for this timestep
        return h_new, c_new

    h_last, c_last = jax.lax.fori_loop(
        0, TT, step, (h_sc[...], c_sc[...]), unroll=True)
    h_sc[...] = h_last
    c_sc[...] = c_last


# ---------------------------------------------------------------------------
# Forward pass
# ---------------------------------------------------------------------------
def lstm_forward(x, params, *, time_block=16, batch_block=None):
    """x: (B, T, input_size) f32 -> (B, T, output_size) f32 (batch_first)."""
    B, T, I = x.shape
    w_ih_t = params["w_ih_t"]        # (I, 4H)
    w_hh_t = params["w_hh_t"]        # (H, 4H)
    b_gates = params["b_gates"]      # (1, 4H)   (= b_ih + b_hh)
    w_out_t = params["w_out_t"]      # (H, O)
    b_out = params["b_out"]          # (1, O)
    H = w_hh_t.shape[0]
    O = w_out_t.shape[1]

    TT = max(1, min(time_block, T))
    t_pad = pl.cdiv(T, TT) * TT

    if batch_block is None or batch_block >= B:
        TB = B                                    # single batch block
    else:
        assert B % batch_block == 0 and batch_block % 8 == 0, (
            "batch_block must divide B and be a multiple of 8")
        TB = batch_block

    # Time-major layout so the recurrence indexes the leading time axis of its
    # VMEM block with ref[t].  Pad T up to a multiple of TT (padded steps are
    # discarded below and never feed a real step).
    x_tbi = jnp.transpose(x, (1, 0, 2))                       # (T, B, I)
    if t_pad != T:
        x_tbi = jnp.pad(x_tbi, ((0, t_pad - T), (0, 0), (0, 0)))

    # K1: input projection for all timesteps at once (parallel GEMM).
    xg2d = _linear(x_tbi.reshape(t_pad * B, I), w_ih_t, b_gates)   # (t_pad*B, 4H)
    xg = xg2d.reshape(t_pad, B, 4 * H)

    # K2: sequential recurrence, TT timesteps per grid step.
    h_all = pl.pallas_call(
        _lstm_recurrence_kernel,
        out_shape=jax.ShapeDtypeStruct((t_pad, B, H), jnp.float32),
        grid_spec=pltpu.PrefetchScalarGridSpec(
            num_scalar_prefetch=0,
            grid=(B // TB, t_pad // TT),
            in_specs=[
                pl.BlockSpec((TT, TB, 4 * H), lambda bb, tb: (tb, bb, 0)),
                # Constant index_map -> DMA'd once, stays VMEM-resident.
                pl.BlockSpec((H, 4 * H), lambda bb, tb: (0, 0)),
            ],
            out_specs=pl.BlockSpec((TT, TB, H), lambda bb, tb: (tb, bb, 0)),
            scratch_shapes=[
                pltpu.VMEM((TB, H), jnp.float32),   # h carry (persists across t)
                pltpu.VMEM((TB, H), jnp.float32),   # c carry
            ],
        ),
        compiler_params=pltpu.CompilerParams(
            dimension_semantics=("parallel", "arbitrary")),
    )(xg, w_hh_t)

    # K3: output Linear over all timesteps at once (parallel GEMM).
    y2d = _linear(h_all.reshape(t_pad * B, H), w_out_t, b_out)     # (t_pad*B, O)
    y = y2d.reshape(t_pad, B, O)[:T]                               # (T, B, O)
    return jnp.transpose(y, (1, 0, 2))                             # (B, T, O)


# ---------------------------------------------------------------------------
# Params / reference
# ---------------------------------------------------------------------------
def init_params(key, input_size, hidden_size, output_size):
    """Deterministic init mimicking nn.LSTM / nn.Linear shapes.

    PyTorch stores weight_ih_l0: (4H, I), weight_hh_l0: (4H, H), biases (4H,),
    outlayer weight (O, H), bias (O,).  We keep the math identical but store
    pre-transposed copies for the kernels.
    """
    ks = jax.random.split(key, 6)
    H, I, O = hidden_size, input_size, output_size
    bound = 1.0 / jnp.sqrt(jnp.float32(H))

    w_ih = jax.random.uniform(ks[0], (4 * H, I), jnp.float32, -bound, bound)
    w_hh = jax.random.uniform(ks[1], (4 * H, H), jnp.float32, -bound, bound)
    b_ih = jax.random.uniform(ks[2], (4 * H,), jnp.float32, -bound, bound)
    b_hh = jax.random.uniform(ks[3], (4 * H,), jnp.float32, -bound, bound)
    w_out = jax.random.uniform(ks[4], (O, H), jnp.float32, -bound, bound)
    b_out = jax.random.uniform(ks[5], (O,), jnp.float32, -bound, bound)

    return {
        "w_ih_t": w_ih.T,                    # (I, 4H)
        "w_hh_t": w_hh.T,                    # (H, 4H)
        "b_gates": (b_ih + b_hh)[None, :],   # (1, 4H)
        "w_out_t": w_out.T,                  # (H, O)
        "b_out": b_out[None, :],             # (1, O)
    }


def lstm_reference(x, params):
    """Pure-JAX reference (lax.scan) for correctness check."""
    B, T, I = x.shape
    H = params["w_hh_t"].shape[0]

    def step(carry, x_t):
        h, c = carry
        gates = (x_t @ params["w_ih_t"] + h @ params["w_hh_t"]
                 + params["b_gates"])
        i = jax.nn.sigmoid(gates[:, 0 * H:1 * H])
        f = jax.nn.sigmoid(gates[:, 1 * H:2 * H])
        g = jnp.tanh(gates[:, 2 * H:3 * H])
        o = jax.nn.sigmoid(gates[:, 3 * H:4 * H])
        c = f * c + i * g
        h = o * jnp.tanh(c)
        y = h @ params["w_out_t"] + params["b_out"]
        return (h, c), y

    h0 = jnp.zeros((B, H), jnp.float32)
    c0 = jnp.zeros((B, H), jnp.float32)
    _, ys = jax.lax.scan(step, (h0, c0), jnp.transpose(x, (1, 0, 2)))
    return jnp.transpose(ys, (1, 0, 2))


if __name__ == "__main__":
    # small shapes: batch=2, seq=8, input_size=4, hidden=32, output=3
    B, T, I, H, O = 2, 8, 4, 32, 3
    key = jax.random.PRNGKey(0)
    k_x, k_p = jax.random.split(key)

    x = jax.random.normal(k_x, (B, T, I), jnp.float32)
    params = init_params(k_p, I, H, O)

    # nn.LSTM dropout only applies between layers (num_layers=1 here) and only
    # in training mode, so the forward pass is deterministic — no-op.
    # time_block=4 -> two time blocks, exercising the h/c scratch carry.
    fwd = jax.jit(functools.partial(lstm_forward, time_block=4))
    out = jax.block_until_ready(fwd(x, params))

    ref = lstm_reference(x, params)
    assert out.shape == (B, T, O)
    assert jnp.allclose(out, ref, atol=1e-4, rtol=1e-4), (
        float(jnp.max(jnp.abs(out - ref))))

    print("KERNEL_OK")
</pallas_src>

<mosaic_0001>
module attributes {stable_mosaic.version = 11 : i64} {
  func.func @_linear_kernel(%arg0: i32, %arg1: memref<128x4xf32, #tpu.memory_space<vmem>>, %arg2: memref<4x128xf32, #tpu.memory_space<vmem>>, %arg3: memref<1x128xf32, #tpu.memory_space<vmem>>, %arg4: memref<128x128xf32, #tpu.memory_space<vmem>>) attributes {dimension_semantics = [#tpu.dimension_semantics<parallel>], iteration_bounds = array<i64: 1>, scalar_prefetch = 0 : i64, scratch_operands = 0 : i64, tpu.core_type = #tpu.core_type<tc>, window_params = [{transform_indices = @transform_0, window_bounds = array<i64: 128, 4>}, {pipeline_mode = #tpu.pipeline_mode<synchronous>, transform_indices = @transform_1, window_bounds = array<i64: 4, 128>}, {pipeline_mode = #tpu.pipeline_mode<synchronous>, transform_indices = @transform_2, window_bounds = array<i64: 1, 128>}, {transform_indices = @transform_3, window_bounds = array<i64: 128, 128>}]} {
    %c0 = arith.constant 0 : index
    %c0_0 = arith.constant 0 : index
    %0 = vector.load %arg1[%c0, %c0_0] : memref<128x4xf32, #tpu.memory_space<vmem>>, vector<128x4xf32>
    %c0_1 = arith.constant 0 : index
    %c0_2 = arith.constant 0 : index
    %1 = vector.load %arg2[%c0_1, %c0_2] : memref<4x128xf32, #tpu.memory_space<vmem>>, vector<4x128xf32>
    %cst = arith.constant dense<0.000000e+00> : vector<128x128xf32>
    %2 = tpu.matmul %0, %1, %cst {dimension_numbers = #tpu.dot_dimension_numbers<[1], [0], [0], [1], [0, 0, 1, 1], [], []>} : vector<128x4xf32>, vector<4x128xf32>, vector<128x128xf32> -> vector<128x128xf32>
    %c0_3 = arith.constant 0 : index
    %c0_4 = arith.constant 0 : index
    %3 = vector.load %arg3[%c0_3, %c0_4] : memref<1x128xf32, #tpu.memory_space<vmem>>, vector<1x128xf32>
    %4 = vector.broadcast %3 : vector<1x128xf32> to vector<128x128xf32>
    %5 = arith.addf %2, %4 : vector<128x128xf32>
    %c0_5 = arith.constant 0 : index
    %c0_6 = arith.constant 0 : index
    %6 = vector.load %arg4[%c0_5, %c0_6] : memref<128x128xf32, #tpu.memory_space<vmem>>, vector<128x128xf32>
    tpu.vector_store %arg4[%c0_5, %c0_6], %5 {strides = array<i32>} : memref<128x128xf32, #tpu.memory_space<vmem>>, vector<128x128xf32>,
    return
  }
  func.func @transform_0(%arg0: i32) -> (i32, i32) {
    %c0_i32 = arith.constant 0 : i32
    %c0_i32_0 = arith.constant 0 : i32
    return %arg0, %c0_i32 : i32, i32
  }
  func.func @transform_1(%arg0: i32) -> (i32, i32) {
    %c0_i32 = arith.constant 0 : i32
    %c0_i32_0 = arith.constant 0 : i32
    %c0_i32_1 = arith.constant 0 : i32
    return %c0_i32, %c0_i32_0 : i32, i32
  }
  func.func @transform_2(%arg0: i32) -> (i32, i32) {
    %c0_i32 = arith.constant 0 : i32
    %c0_i32_0 = arith.constant 0 : i32
    %c0_i32_1 = arith.constant 0 : i32
    return %c0_i32, %c0_i32_0 : i32, i32
  }
  func.func @transform_3(%arg0: i32) -> (i32, i32) {
    %c0_i32 = arith.constant 0 : i32
    %c0_i32_0 = arith.constant 0 : i32
    return %arg0, %c0_i32 : i32, i32
  }
}

module attributes {stable_mosaic.version = 11 : i64} {
  func.func @_linear_kernel(%arg0: i32, %arg1: memref<128x32xf32, #tpu.memory_space<vmem>>, %arg2: memref<32x3xf32, #tpu.memory_space<vmem>>, %arg3: memref<1x3xf32, #tpu.memory_space<vmem>>, %arg4: memref<128x3xf32, #tpu.memory_space<vmem>>) attributes {dimension_semantics = [#tpu.dimension_semantics<parallel>], iteration_bounds = array<i64: 1>, scalar_prefetch = 0 : i64, scratch_operands = 0 : i64, tpu.core_type = #tpu.core_type<tc>, window_params = [{transform_indices = @transform_0, window_bounds = array<i64: 128, 32>}, {pipeline_mode = #tpu.pipeline_mode<synchronous>, transform_indices = @transform_1, window_bounds = array<i64: 32, 3>}, {pipeline_mode = #tpu.pipeline_mode<synchronous>, transform_indices = @transform_2, window_bounds = array<i64: 1, 3>}, {transform_indices = @transform_3, window_bounds = array<i64: 128, 3>}]} {
    %c0 = arith.constant 0 : index
    %c0_0 = arith.constant 0 : index
    %0 = vector.load %arg1[%c0, %c0_0] : memref<128x32xf32, #tpu.memory_space<vmem>>, vector<128x32xf32>
    %c0_1 = arith.constant 0 : index
    %c0_2 = arith.constant 0 : index
    %1 = vector.load %arg2[%c0_1, %c0_2] : memref<32x3xf32, #tpu.memory_space<vmem>>, vector<32x3xf32>
    %cst = arith.constant dense<0.000000e+00> : vector<128x3xf32>
    %2 = tpu.matmul %0, %1, %cst {dimension_numbers = #tpu.dot_dimension_numbers<[1], [0], [0], [1], [0, 0, 1, 1], [], []>} : vector<128x32xf32>, vector<32x3xf32>, vector<128x3xf32> -> vector<128x3xf32>
    %c0_3 = arith.constant 0 : index
    %c0_4 = arith.constant 0 : index
    %3 = vector.load %arg3[%c0_3, %c0_4] : memref<1x3xf32, #tpu.memory_space<vmem>>, vector<1x3xf32>
    %4 = vector.broadcast %3 : vector<1x3xf32> to vector<128x3xf32>
    %5 = arith.addf %2, %4 : vector<128x3xf32>
    %c0_5 = arith.constant 0 : index
    %c0_6 = arith.constant 0 : index
    %6 = vector.load %arg4[%c0_5, %c0_6] : memref<128x3xf32, #tpu.memory_space<vmem>>, vector<128x3xf32>
    tpu.vector_store %arg4[%c0_5, %c0_6], %5 {strides = array<i32>} : memref<128x3xf32, #tpu.memory_space<vmem>>, vector<128x3xf32>,
    return
  }
  func.func @transform_0(%arg0: i32) -> (i32, i32) {
    %c0_i32 = arith.constant 0 : i32
    %c0_i32_0 = arith.constant 0 : i32
    return %arg0, %c0_i32 : i32, i32
  }
  func.func @transform_1(%arg0: i32) -> (i32, i32) {
    %c0_i32 = arith.constant 0 : i32
    %c0_i32_0 = arith.constant 0 : i32
    %c0_i32_1 = arith.constant 0 : i32
    return %c0_i32, %c0_i32_0 : i32, i32
  }
  func.func @transform_2(%arg0: i32) -> (i32, i32) {
    %c0_i32 = arith.constant 0 : i32
    %c0_i32_0 = arith.constant 0 : i32
    %c0_i32_1 = arith.constant 0 : i32
    return %c0_i32, %c0_i32_0 : i32, i32
  }
  func.func @transform_3(%arg0: i32) -> (i32, i32) {
    %c0_i32 = arith.constant 0 : i32
    %c0_i32_0 = arith.constant 0 : i32
    return %arg0, %c0_i32 : i32, i32
  }
}

module attributes {stable_mosaic.version = 11 : i64} {
  func.func @_lstm_recurrence_kernel(%arg0: i32, %arg1: i32, %arg2: memref<4x2x128xf32, #tpu.memory_space<vmem>>, %arg3: memref<32x128xf32, #tpu.memory_space<vmem>>, %arg4: memref<4x2x32xf32, #tpu.memory_space<vmem>>, %arg5: memref<2x32xf32, #tpu.memory_space<vmem>>, %arg6: memref<2x32xf32, #tpu.memory_space<vmem>>) attributes {dimension_semantics = [#tpu.dimension_semantics<parallel>, #tpu.dimension_semantics<arbitrary>], iteration_bounds = array<i64: 1, 2>, scalar_prefetch = 0 : i64, scratch_operands = 2 : i64, tpu.core_type = #tpu.core_type<tc>, window_params = [{transform_indices = @transform_0, window_bounds = array<i64: 4, 2, 128>}, {pipeline_mode = #tpu.pipeline_mode<synchronous>, transform_indices = @transform_1, window_bounds = array<i64: 32, 128>}, {transform_indices = @transform_2, window_bounds = array<i64: 4, 2, 32>}]} {
    %c0_i32 = arith.constant 0 : i32
    %0 = arith.cmpi eq, %arg1, %c0_i32 : i32
    %1 = arith.extui %0 : i1 to i32
    %c0_i32_0 = arith.constant 0 : i32
    %2 = arith.cmpi ne, %1, %c0_i32_0 : i32
    scf.if %2 {
      %cst_42 = arith.constant 0.000000e+00 : f32
      %144 = vector.broadcast %cst_42 : f32 to vector<2x32xf32>
      %c0_43 = arith.constant 0 : index
      %c0_44 = arith.constant 0 : index
      %145 = vector.load %arg5[%c0_43, %c0_44] : memref<2x32xf32, #tpu.memory_space<vmem>>, vector<2x32xf32>
      tpu.vector_store %arg5[%c0_43, %c0_44], %144 {strides = array<i32>} : memref<2x32xf32, #tpu.memory_space<vmem>>, vector<2x32xf32>,
      %cst_45 = arith.constant 0.000000e+00 : f32
      %146 = vector.broadcast %cst_45 : f32 to vector<2x32xf32>
      %c0_46 = arith.constant 0 : index
      %c0_47 = arith.constant 0 : index
      %147 = vector.load %arg6[%c0_46, %c0_47] : memref<2x32xf32, #tpu.memory_space<vmem>>, vector<2x32xf32>
      tpu.vector_store %arg6[%c0_46, %c0_47], %146 {strides = array<i32>} : memref<2x32xf32, #tpu.memory_space<vmem>>, vector<2x32xf32>,
    } else {
    }
    %c0 = arith.constant 0 : index
    %c0_1 = arith.constant 0 : index
    %3 = vector.load %arg3[%c0, %c0_1] : memref<32x128xf32, #tpu.memory_space<vmem>>, vector<32x128xf32>
    %c0_2 = arith.constant 0 : index
    %c0_3 = arith.constant 0 : index
    %4 = vector.load %arg5[%c0_2, %c0_3] : memref<2x32xf32, #tpu.memory_space<vmem>>, vector<2x32xf32>
    %c0_4 = arith.constant 0 : index
    %c0_5 = arith.constant 0 : index
    %5 = vector.load %arg6[%c0_4, %c0_5] : memref<2x32xf32, #tpu.memory_space<vmem>>, vector<2x32xf32>
    %c0_i32_6 = arith.constant 0 : i32
    %6 = arith.index_cast %c0_i32_6 : i32 to index
    %c0_7 = arith.constant 0 : index
    %c0_8 = arith.constant 0 : index
    %7 = vector.load %arg2[%6, %c0_7, %c0_8] : memref<4x2x128xf32, #tpu.memory_space<vmem>>, vector<1x2x128xf32>
    %8 = vector.shape_cast %7 : vector<1x2x128xf32> to vector<2x128xf32>
    %cst = arith.constant dense<0.000000e+00> : vector<2x128xf32>
    %9 = tpu.matmul %4, %3, %cst {dimension_numbers = #tpu.dot_dimension_numbers<[1], [0], [0], [1], [0, 0, 1, 1], [], []>} : vector<2x32xf32>, vector<32x128xf32>, vector<2x128xf32> -> vector<2x128xf32>
    %10 = arith.addf %8, %9 : vector<2x128xf32>
    %11 = vector.extract_strided_slice %10 {offsets = [0, 0], sizes = [2, 32], strides = [1, 1]} : vector<2x128xf32> to vector<2x32xf32>
    %12 = arith.negf %11 : vector<2x32xf32>
    %13 = math.exp %12 : vector<2x32xf32>
    %cst_9 = arith.constant 1.000000e+00 : f32
    %14 = vector.broadcast %cst_9 : f32 to vector<2x32xf32>
    %15 = arith.addf %14, %13 : vector<2x32xf32>
    %16 = arith.divf %14, %15 : vector<2x32xf32>
    %17 = vector.extract_strided_slice %10 {offsets = [0, 32], sizes = [2, 32], strides = [1, 1]} : vector<2x128xf32> to vector<2x32xf32>
    %18 = arith.negf %17 : vector<2x32xf32>
    %19 = math.exp %18 : vector<2x32xf32>
    %cst_10 = arith.constant 1.000000e+00 : f32
    %20 = vector.broadcast %cst_10 : f32 to vector<2x32xf32>
    %21 = arith.addf %20, %19 : vector<2x32xf32>
    %22 = arith.divf %20, %21 : vector<2x32xf32>
    %23 = vector.extract_strided_slice %10 {offsets = [0, 64], sizes = [2, 32], strides = [1, 1]} : vector<2x128xf32> to vector<2x32xf32>
    %24 = math.tanh %23 : vector<2x32xf32>
    %25 = vector.extract_strided_slice %10 {offsets = [0, 96], sizes = [2, 32], strides = [1, 1]} : vector<2x128xf32> to vector<2x32xf32>
    %26 = arith.negf %25 : vector<2x32xf32>
    %27 = math.exp %26 : vector<2x32xf32>
    %cst_11 = arith.constant 1.000000e+00 : f32
    %28 = vector.broadcast %cst_11 : f32 to vector<2x32xf32>
    %29 = arith.addf %28, %27 : vector<2x32xf32>
    %30 = arith.divf %28, %29 : vector<2x32xf32>
    %31 = arith.mulf %22, %5 : vector<2x32xf32>
    %32 = arith.mulf %16, %24 : vector<2x32xf32>
    %33 = arith.addf %31, %32 : vector<2x32xf32>
    %34 = math.tanh %33 : vector<2x32xf32>
    %35 = arith.mulf %30, %34 : vector<2x32xf32>
    %36 = arith.index_cast %c0_i32_6 : i32 to index
    %c0_12 = arith.constant 0 : index
    %c0_13 = arith.constant 0 : index
    %37 = vector.load %arg4[%36, %c0_12, %c0_13] : memref<4x2x32xf32, #tpu.memory_space<vmem>>, vector<1x2x32xf32>
    %38 = vector.shape_cast %37 : vector<1x2x32xf32> to vector<2x32xf32>
    %39 = vector.shape_cast %35 : vector<2x32xf32> to vector<1x2x32xf32>
    tpu.vector_store %arg4[%36, %c0_12, %c0_13], %39 {strides = array<i32>} : memref<4x2x32xf32, #tpu.memory_space<vmem>>, vector<1x2x32xf32>,
    %c1_i32 = arith.constant 1 : i32
    %40 = arith.index_cast %c1_i32 : i32 to index
    %c0_14 = arith.constant 0 : index
    %c0_15 = arith.constant 0 : index
    %41 = vector.load %arg2[%40, %c0_14, %c0_15] : memref<4x2x128xf32, #tpu.memory_space<vmem>>, vector<1x2x128xf32>
    %42 = vector.shape_cast %41 : vector<1x2x128xf32> to vector<2x128xf32>
    %cst_16 = arith.constant dense<0.000000e+00> : vector<2x128xf32>
    %43 = tpu.matmul %35, %3, %cst_16 {dimension_numbers = #tpu.dot_dimension_numbers<[1], [0], [0], [1], [0, 0, 1, 1], [], []>} : vector<2x32xf32>, vector<32x128xf32>, vector<2x128xf32> -> vector<2x128xf32>
    %44 = arith.addf %42, %43 : vector<2x128xf32>
    %45 = vector.extract_strided_slice %44 {offsets = [0, 0], sizes = [2, 32], strides = [1, 1]} : vector<2x128xf32> to vector<2x32xf32>
    %46 = arith.negf %45 : vector<2x32xf32>
    %47 = math.exp %46 : vector<2x32xf32>
    %cst_17 = arith.constant 1.000000e+00 : f32
    %48 = vector.broadcast %cst_17 : f32 to vector<2x32xf32>
    %49 = arith.addf %48, %47 : vector<2x32xf32>
    %50 = arith.divf %48, %49 : vector<2x32xf32>
    %51 = vector.extract_strided_slice %44 {offsets = [0, 32], sizes = [2, 32], strides = [1, 1]} : vector<2x128xf32> to vector<2x32xf32>
    %52 = arith.negf %51 : vector<2x32xf32>
    %53 = math.exp %52 : vector<2x32xf32>
    %cst_18 = arith.constant 1.000000e+00 : f32
    %54 = vector.broadcast %cst_18 : f32 to vector<2x32xf32>
    %55 = arith.addf %54, %53 : vector<2x32xf32>
    %56 = arith.divf %54, %55 : vector<2x32xf32>
    %57 = vector.extract_strided_slice %44 {offsets = [0, 64], sizes = [2, 32], strides = [1, 1]} : vector<2x128xf32> to vector<2x32xf32>
    %58 = math.tanh %57 : vector<2x32xf32>
    %59 = vector.extract_strided_slice %44 {offsets = [0, 96], sizes = [2, 32], strides = [1, 1]} : vector<2x128xf32> to vector<2x32xf32>
    %60 = arith.negf %59 : vector<2x32xf32>
    %61 = math.exp %60 : vector<2x32xf32>
    %cst_19 = arith.constant 1.000000e+00 : f32
    %62 = vector.broadcast %cst_19 : f32 to vector<2x32xf32>
    %63 = arith.addf %62, %61 : vector<2x32xf32>
    %64 = arith.divf %62, %63 : vector<2x32xf32>
    %65 = arith.mulf %56, %33 : vector<2x32xf32>
    %66 = arith.mulf %50, %58 : vector<2x32xf32>
    %67 = arith.addf %65, %66 : vector<2x32xf32>
    %68 = math.tanh %67 : vector<2x32xf32>
    %69 = arith.mulf %64, %68 : vector<2x32xf32>
    %70 = arith.index_cast %c1_i32 : i32 to index
    %c0_20 = arith.constant 0 : index
    %c0_21 = arith.constant 0 : index
    %71 = vector.load %arg4[%70, %c0_20, %c0_21] : memref<4x2x32xf32, #tpu.memory_space<vmem>>, vector<1x2x32xf32>
    %72 = vector.shape_cast %71 : vector<1x2x32xf32> to vector<2x32xf32>
    %73 = vector.shape_cast %69 : vector<2x32xf32> to vector<1x2x32xf32>
    tpu.vector_store %arg4[%70, %c0_20, %c0_21], %73 {strides = array<i32>} : memref<4x2x32xf32, #tpu.memory_space<vmem>>, vector<1x2x32xf32>,
    %c2_i32 = arith.constant 2 : i32
    %74 = arith.index_cast %c2_i32 : i32 to index
    %c0_22 = arith.constant 0 : index
    %c0_23 = arith.constant 0 : index
    %75 = vector.load %arg2[%74, %c0_22, %c0_23] : memref<4x2x128xf32, #tpu.memory_space<vmem>>, vector<1x2x128xf32>
    %76 = vector.shape_cast %75 : vector<1x2x128xf32> to vector<2x128xf32>
    %cst_24 = arith.constant dense<0.000000e+00> : vector<2x128xf32>
    %77 = tpu.matmul %69, %3, %cst_24 {dimension_numbers = #tpu.dot_dimension_numbers<[1], [0], [0], [1], [0, 0, 1, 1], [], []>} : vector<2x32xf32>, vector<32x128xf32>, vector<2x128xf32> -> vector<2x128xf32>
    %78 = arith.addf %76, %77 : vector<2x128xf32>
    %79 = vector.extract_strided_slice %78 {offsets = [0, 0], sizes = [2, 32], strides = [1, 1]} : vector<2x128xf32> to vector<2x32xf32>
    %80 = arith.negf %79 : vector<2x32xf32>
    %81 = math.exp %80 : vector<2x32xf32>
    %cst_25 = arith.constant 1.000000e+00 : f32
    %82 = vector.broadcast %cst_25 : f32 to vector<2x32xf32>
    %83 = arith.addf %82, %81 : vector<2x32xf32>
    %84 = arith.divf %82, %83 : vector<2x32xf32>
    %85 = vector.extract_strided_slice %78 {offsets = [0, 32], sizes = [2, 32], strides = [1, 1]} : vector<2x128xf32> to vector<2x32xf32>
    %86 = arith.negf %85 : vector<2x32xf32>
    %87 = math.exp %86 : vector<2x32xf32>
    %cst_26 = arith.constant 1.000000e+00 : f32
    %88 = vector.broadcast %cst_26 : f32 to vector<2x32xf32>
    %89 = arith.addf %88, %87 : vector<2x32xf32>
    %90 = arith.divf %88, %89 : vector<2x32xf32>
    %91 = vector.extract_strided_slice %78 {offsets = [0, 64], sizes = [2, 32], strides = [1, 1]} : vector<2x128xf32> to vector<2x32xf32>
    %92 = math.tanh %91 : vector<2x32xf32>
    %93 = vector.extract_strided_slice %78 {offsets = [0, 96], sizes = [2, 32], strides = [1, 1]} : vector<2x128xf32> to vector<2x32xf32>
    %94 = arith.negf %93 : vector<2x32xf32>
    %95 = math.exp %94 : vector<2x32xf32>
    %cst_27 = arith.constant 1.000000e+00 : f32
    %96 = vector.broadcast %cst_27 : f32 to vector<2x32xf32>
    %97 = arith.addf %96, %95 : vector<2x32xf32>
    %98 = arith.divf %96, %97 : vector<2x32xf32>
    %99 = arith.mulf %90, %67 : vector<2x32xf32>
    %100 = arith.mulf %84, %92 : vector<2x32xf32>
    %101 = arith.addf %99, %100 : vector<2x32xf32>
    %102 = math.tanh %101 : vector<2x32xf32>
    %103 = arith.mulf %98, %102 : vector<2x32xf32>
    %104 = arith.index_cast %c2_i32 : i32 to index
    %c0_28 = arith.constant 0 : index
    %c0_29 = arith.constant 0 : index
    %105 = vector.load %arg4[%104, %c0_28, %c0_29] : memref<4x2x32xf32, #tpu.memory_space<vmem>>, vector<1x2x32xf32>
    %106 = vector.shape_cast %105 : vector<1x2x32xf32> to vector<2x32xf32>
    %107 = vector.shape_cast %103 : vector<2x32xf32> to vector<1x2x32xf32>
    tpu.vector_store %arg4[%104, %c0_28, %c0_29], %107 {strides = array<i32>} : memref<4x2x32xf32, #tpu.memory_space<vmem>>, vector<1x2x32xf32>,
    %c3_i32 = arith.constant 3 : i32
    %108 = arith.index_cast %c3_i32 : i32 to index
    %c0_30 = arith.constant 0 : index
    %c0_31 = arith.constant 0 : index
    %109 = vector.load %arg2[%108, %c0_30, %c0_31] : memref<4x2x128xf32, #tpu.memory_space<vmem>>, vector<1x2x128xf32>
    %110 = vector.shape_cast %109 : vector<1x2x128xf32> to vector<2x128xf32>
    %cst_32 = arith.constant dense<0.000000e+00> : vector<2x128xf32>
    %111 = tpu.matmul %103, %3, %cst_32 {dimension_numbers = #tpu.dot_dimension_numbers<[1], [0], [0], [1], [0, 0, 1, 1], [], []>} : vector<2x32xf32>, vector<32x128xf32>, vector<2x128xf32> -> vector<2x128xf32>
    %112 = arith.addf %110, %111 : vector<2x128xf32>
    %113 = vector.extract_strided_slice %112 {offsets = [0, 0], sizes = [2, 32], strides = [1, 1]} : vector<2x128xf32> to vector<2x32xf32>
    %114 = arith.negf %113 : vector<2x32xf32>
    %115 = math.exp %114 : vector<2x32xf32>
    %cst_33 = arith.constant 1.000000e+00 : f32
    %116 = vector.broadcast %cst_33 : f32 to vector<2x32xf32>
    %117 = arith.addf %116, %115 : vector<2x32xf32>
    %118 = arith.divf %116, %117 : vector<2x32xf32>
    %119 = vector.extract_strided_slice %112 {offsets = [0, 32], sizes = [2, 32], strides = [1, 1]} : vector<2x128xf32> to vector<2x32xf32>
    %120 = arith.negf %119 : vector<2x32xf32>
    %121 = math.exp %120 : vector<2x32xf32>
    %cst_34 = arith.constant 1.000000e+00 : f32
    %122 = vector.broadcast %cst_34 : f32 to vector<2x32xf32>
    %123 = arith.addf %122, %121 : vector<2x32xf32>
    %124 = arith.divf %122, %123 : vector<2x32xf32>
    %125 = vector.extract_strided_slice %112 {offsets = [0, 64], sizes = [2, 32], strides = [1, 1]} : vector<2x128xf32> to vector<2x32xf32>
    %126 = math.tanh %125 : vector<2x32xf32>
    %127 = vector.extract_strided_slice %112 {offsets = [0, 96], sizes = [2, 32], strides = [1, 1]} : vector<2x128xf32> to vector<2x32xf32>
    %128 = arith.negf %127 : vector<2x32xf32>
    %129 = math.exp %128 : vector<2x32xf32>
    %cst_35 = arith.constant 1.000000e+00 : f32
    %130 = vector.broadcast %cst_35 : f32 to vector<2x32xf32>
    %131 = arith.addf %130, %129 : vector<2x32xf32>
    %132 = arith.divf %130, %131 : vector<2x32xf32>
    %133 = arith.mulf %124, %101 : vector<2x32xf32>
    %134 = arith.mulf %118, %126 : vector<2x32xf32>
    %135 = arith.addf %133, %134 : vector<2x32xf32>
    %136 = math.tanh %135 : vector<2x32xf32>
    %137 = arith.mulf %132, %136 : vector<2x32xf32>
    %138 = arith.index_cast %c3_i32 : i32 to index
    %c0_36 = arith.constant 0 : index
    %c0_37 = arith.constant 0 : index
    %139 = vector.load %arg4[%138, %c0_36, %c0_37] : memref<4x2x32xf32, #tpu.memory_space<vmem>>, vector<1x2x32xf32>
    %140 = vector.shape_cast %139 : vector<1x2x32xf32> to vector<2x32xf32>
    %141 = vector.shape_cast %137 : vector<2x32xf32> to vector<1x2x32xf32>
    tpu.vector_store %arg4[%138, %c0_36, %c0_37], %141 {strides = array<i32>} : memref<4x2x32xf32, #tpu.memory_space<vmem>>, vector<1x2x32xf32>,
    %c4_i32 = arith.constant 4 : i32
    %c0_38 = arith.constant 0 : index
    %c0_39 = arith.constant 0 : index
    %142 = vector.load %arg5[%c0_38, %c0_39] : memref<2x32xf32, #tpu.memory_space<vmem>>, vector<2x32xf32>
    tpu.vector_store %arg5[%c0_38, %c0_39], %137 {strides = array<i32>} : memref<2x32xf32, #tpu.memory_space<vmem>>, vector<2x32xf32>,
    %c0_40 = arith.constant 0 : index
    %c0_41 = arith.constant 0 : index
    %143 = vector.load %arg6[%c0_40, %c0_41] : memref<2x32xf32, #tpu.memory_space<vmem>>, vector<2x32xf32>
    tpu.vector_store %arg6[%c0_40, %c0_41], %135 {strides = array<i32>} : memref<2x32xf32, #tpu.memory_space<vmem>>, vector<2x32xf32>,
    return
  }
  func.func @transform_0(%arg0: i32, %arg1: i32) -> (i32, i32, i32) {
    %c0_i32 = arith.constant 0 : i32
    %c0_i32_0 = arith.constant 0 : i32
    return %arg1, %arg0, %c0_i32 : i32, i32, i32
  }
  func.func @transform_1(%arg0: i32, %arg1: i32) -> (i32, i32) {
    %c0_i32 = arith.constant 0 : i32
    %c0_i32_0 = arith.constant 0 : i32
    %c0_i32_1 = arith.constant 0 : i32
    return %c0_i32, %c0_i32_0 : i32, i32
  }
  func.func @transform_2(%arg0: i32, %arg1: i32) -> (i32, i32, i32) {
    %c0_i32 = arith.constant 0 : i32
    %c0_i32_0 = arith.constant 0 : i32
    return %arg1, %arg0, %c0_i32 : i32, i32, i32
  }
}

</mosaic_0001>

<llo_original>
// kernel: lstm_forward.5
$region0: #{lstm_forward.5}
  #allocation0 [shape = 'u32[]', space=smem, size = 0x4, offset = 0x4, fixed_abs, tag = 'smem constant byte address 0x4 - core index']
  #allocation1 [shape = 'u32[144,128]{1,0:T(1,128)}', space=vmem, size = 0x12000, scoped, tag = 'internal scratch']
  %s0 = inlined_call_operand.vmem [shape: f32[128,32], index: 0, kind: input, shape index: {}]
  %s1 = inlined_call_operand.vmem [shape: f32[32,3], index: 1, kind: input, shape index: {}]
  %s2 = inlined_call_operand.vmem [shape: f32[1,3], index: 2, kind: input, shape index: {}]
  %s3 = inlined_call_operand.vmem [shape: f32[128,3], index: 3, kind: output, shape index: {}]
  %s4 = sld [smem:[#allocation0]]
  $region22: #{lstm_forward.5} parent=0
    _
  %s6 = ssub.s32 1, %s4
  %s7 = scalar_select 0, %s6, %s4
  // Predicated region
  $region2: #{lstm_forward.5} parent=0 // pred_check
    _
  $region3: #{lstm_forward.5} parent=0 // pred_check_branch
    %9 = sbr.rel (0) target = $region5
  $region4: #{lstm_forward.5} parent=0 // pred_region
    _
  $region5: #{lstm_forward.5} parent=0 // pred_fallthru
    _
  // Predicated region
  $region6: #{lstm_forward.5} parent=0 // pred_check
    _
  $region7: #{lstm_forward.5} parent=0 // pred_check_branch
    %11 = sbr.rel (0) target = $region9
  $region8: #{lstm_forward.5} parent=0 // pred_region
    _
  $region9: #{lstm_forward.5} parent=0 // pred_fallthru
    _
  // Predicated region
  $region10: #{lstm_forward.5} parent=0 // pred_check
    _
  $region11: #{lstm_forward.5} parent=0 // pred_check_branch
    %13 = sbr.rel (0) target = $region13
  $region12: #{lstm_forward.5} parent=0 // pred_region
    _
  $region13: #{lstm_forward.5} parent=0 // pred_fallthru
    _
  %v14 = vld [vmem:[%s0] sm:$0xff]
  %v15 = vld [vmem:[%s0 + $0x8] sm:$0xff]
  %v16 = vld [vmem:[%s0 + $0x10] sm:$0xff]
  %v17 = vld [vmem:[%s0 + $0x18] sm:$0xff]
  %v18 = vld [vmem:[%s0 + $0x20] sm:$0xff]
  %v19 = vld [vmem:[%s0 + $0x28] sm:$0xff]
  %v20 = vld [vmem:[%s0 + $0x30] sm:$0xff]
  %v21 = vld [vmem:[%s0 + $0x38] sm:$0xff]
  %v22 = vld [vmem:[%s0 + $0x40] sm:$0xff]
  %v23 = vld [vmem:[%s0 + $0x48] sm:$0xff]
  %v24 = vld [vmem:[%s0 + $0x50] sm:$0xff]
  %v25 = vld [vmem:[%s0 + $0x58] sm:$0xff]
  %v26 = vld [vmem:[%s0 + $0x60] sm:$0xff]
  %v27 = vld [vmem:[%s0 + $0x68] sm:$0xff]
  %v28 = vld [vmem:[%s0 + $0x70] sm:$0xff]
  %v29 = vld [vmem:[%s0 + $0x78] sm:$0xff]
  %v30 = vld [vmem:[%s1] sm:$0xff]
  %v31 = vld [vmem:[%s1 + $0x8] sm:$0xff]
  %v32 = vld [vmem:[%s1 + $0x10] sm:$0xff]
  %v33 = vld [vmem:[%s1 + $0x18] sm:$0xff]
  %v34 = vld [vmem:[%s2] sm:$0x1]
  %v36 = vlaneseq
  %v37 = vshrl.u32 %v36, 7
  %v38 = vsub.s32 0, %v37
  %v39 = vrot.slane %v34, %v38
  %vm41 = vcmask 261120
  %v43 = vsel %vm41, %v14, 0
  %v46 = vsel %vm41, %v15, 0
  %v49 = vsel %vm41, %v16, 0
  %v52 = vsel %vm41, %v17, 0
  %v55 = vsel %vm41, %v18, 0
  %v58 = vsel %vm41, %v19, 0
  %v61 = vsel %vm41, %v20, 0
  %v64 = vsel %vm41, %v21, 0
  %v67 = vsel %vm41, %v22, 0
  %v70 = vsel %vm41, %v23, 0
  %v73 = vsel %vm41, %v24, 0
  %v76 = vsel %vm41, %v25, 0
  %v79 = vsel %vm41, %v26, 0
  %v82 = vsel %vm41, %v27, 0
  %v85 = vsel %vm41, %v28, 0
  %v88 = vsel %vm41, %v29, 0
  %90 = vmatprep.subr.mxu0 0.0
  %91 = vmatpush1.msra.mxu0 0.0
  %92 = vmatprep.subr.mxu0 0.0
  %93 = vmatpush1.msra.mxu0 0.0
  %94 = vmatprep.subr.mxu0 0.0
  %95 = vmatpush1.msra.mxu0 0.0
  %96 = vmatprep.subr.mxu0 0.0
  %97 = vmatpush1.msra.mxu0 0.0
  %98 = vmatprep.subr.mxu0 0.0
  %99 = vmatpush1.msra.mxu0 0.0
  %100 = vmatprep.subr.mxu0 0.0
  %101 = vmatpush1.msra.mxu0 0.0
  %102 = vmatprep.subr.mxu0 0.0
  %103 = vmatpush1.msra.mxu0 0.0
  %104 = vmatprep.subr.mxu0 0.0
  %105 = vmatpush1.msra.mxu0 0.0
  %106 = vmatprep.subr.mxu0 0.0
  %107 = vmatpush1.msra.mxu0 0.0
  %108 = vmatprep.subr.mxu0 0.0
  %109 = vmatpush1.msra.mxu0 0.0
  %110 = vmatprep.subr.mxu0 0.0
  %111 = vmatpush1.msra.mxu0 0.0
  %112 = vmatprep.subr.mxu0 0.0
  %113 = vmatpush1.msra.mxu0 0.0
  %114 = vmatprep.subr.mxu0 0.0
  %115 = vmatpush1.msra.mxu0 %v33
  %116 = vmatprep.subr.mxu0 0.0
  %117 = vmatpush1.msra.mxu0 %v32
  %118 = vmatprep.subr.mxu0 0.0
  %119 = vmatpush1.msra.mxu0 %v31
  %120 = vmatprep.subr.mxu0 0.0
  %121 = vmatpush1.msra.mxu0 %v30
  %122 = vmatprep.subr.mxu0 0.0
  %123 = vmatpush2.msra.mxu0 0.0
  %124 = vmatprep.subr.mxu0 0.0
  %125 = vmatpush2.msra.mxu0 0.0
  %126 = vmatprep.subr.mxu0 0.0
  %127 = vmatpush2.msra.mxu0 0.0
  %128 = vmatprep.subr.mxu0 0.0
  %129 = vmatpush2.msra.mxu0 0.0
  %130 = vmatprep.subr.mxu0 0.0
  %131 = vmatpush2.msra.mxu0 0.0
  %132 = vmatprep.subr.mxu0 0.0
  %133 = vmatpush2.msra.mxu0 0.0
  %134 = vmatprep.subr.mxu0 0.0
  %135 = vmatpush2.msra.mxu0 0.0
  %136 = vmatprep.subr.mxu0 0.0
  %137 = vmatpush2.msra.mxu0 0.0
  %138 = vmatprep.subr.mxu0 0.0
  %139 = vmatpush2.msra.mxu0 0.0
  %140 = vmatprep.subr.mxu0 0.0
  %141 = vmatpush2.msra.mxu0 0.0
  %142 = vmatprep.subr.mxu0 0.0
  %143 = vmatpush2.msra.mxu0 0.0
  %144 = vmatprep.subr.mxu0 0.0
  %145 = vmatpush2.msra.mxu0 0.0
  %146 = vmatprep.subr.mxu0 0.0
  %147 = vmatpush2.msra.mxu0 0.0
  %148 = vmatprep.subr.mxu0 0.0
  %149 = vmatpush2.msra.mxu0 0.0
  %150 = vmatprep.subr.mxu0 0.0
  %151 = vmatpush2.msra.mxu0 0.0
  %152 = vmatprep.subr.mxu0 0.0
  %153 = vmatpush2.msra.mxu0 0.0
  %154 = vmatprep.mubr.f32.mxu0 0.0
  %155 = vmatmul.mubr.f32.gmra.mxu0 %v43
  %v156 = vpop.f32.mrf.mxu0
  %v157 = vadd.f32 %v39, %v156
  %v158 = vpop.f32.mrf.mxu0
  %159 = vmatprep.mubr.f32.mxu0 0.0
  %160 = vmatmul.mubr.f32.gmra.mxu0 %v46
  %v161 = vpop.f32.mrf.mxu0
  %v162 = vadd.f32 %v39, %v161
  %v163 = vpop.f32.mrf.mxu0
  %164 = vmatprep.mubr.f32.mxu0 0.0
  %165 = vmatmul.mubr.f32.gmra.mxu0 %v49
  %v166 = vpop.f32.mrf.mxu0
  %v167 = vadd.f32 %v39, %v166
  %v168 = vpop.f32.mrf.mxu0
  %169 = vmatprep.mubr.f32.mxu0 0.0
  %170 = vmatmul.mubr.f32.gmra.mxu0 %v52
  %v171 = vpop.f32.mrf.mxu0
  %v172 = vadd.f32 %v39, %v171
  %v173 = vpop.f32.mrf.mxu0
  %174 = vmatprep.mubr.f32.mxu0 0.0
  %175 = vmatmul.mubr.f32.gmra.mxu0 %v55
  %v176 = vpop.f32.mrf.mxu0
  %v177 = vadd.f32 %v39, %v176
  %v178 = vpop.f32.mrf.mxu0
  %179 = vmatprep.mubr.f32.mxu0 0.0
  %180 = vmatmul.mubr.f32.gmra.mxu0 %v58
  %v181 = vpop.f32.mrf.mxu0
  %v182 = vadd.f32 %v39, %v181
  %v183 = vpop.f32.mrf.mxu0
  %184 = vmatprep.mubr.f32.mxu0 0.0
  %185 = vmatmul.mubr.f32.gmra.mxu0 %v61
  %v186 = vpop.f32.mrf.mxu0
  %v187 = vadd.f32 %v39, %v186
  %v188 = vpop.f32.mrf.mxu0
  %189 = vmatprep.mubr.f32.mxu0 0.0
  %190 = vmatmul.mubr.f32.gmra.mxu0 %v64
  %v191 = vpop.f32.mrf.mxu0
  %v192 = vadd.f32 %v39, %v191
  %v193 = vpop.f32.mrf.mxu0
  %194 = vmatprep.mubr.f32.mxu0 0.0
  %195 = vmatmul.mubr.f32.gmra.mxu0 %v67
  %v196 = vpop.f32.mrf.mxu0
  %v197 = vadd.f32 %v39, %v196
  %v198 = vpop.f32.mrf.mxu0
  %199 = vmatprep.mubr.f32.mxu0 0.0
  %200 = vmatmul.mubr.f32.gmra.mxu0 %v70
  %v201 = vpop.f32.mrf.mxu0
  %v202 = vadd.f32 %v39, %v201
  %v203 = vpop.f32.mrf.mxu0
  %204 = vmatprep.mubr.f32.mxu0 0.0
  %205 = vmatmul.mubr.f32.gmra.mxu0 %v73
  %v206 = vpop.f32.mrf.mxu0
  %v207 = vadd.f32 %v39, %v206
  %v208 = vpop.f32.mrf.mxu0
  %209 = vmatprep.mubr.f32.mxu0 0.0
  %210 = vmatmul.mubr.f32.gmra.mxu0 %v76
  %v211 = vpop.f32.mrf.mxu0
  %v212 = vadd.f32 %v39, %v211
  %v213 = vpop.f32.mrf.mxu0
  %214 = vmatprep.mubr.f32.mxu0 0.0
  %215 = vmatmul.mubr.f32.gmra.mxu0 %v79
  %v216 = vpop.f32.mrf.mxu0
  %v217 = vadd.f32 %v39, %v216
  %v218 = vpop.f32.mrf.mxu0
  %219 = vmatprep.mubr.f32.mxu0 0.0
  %220 = vmatmul.mubr.f32.gmra.mxu0 %v82
  %v221 = vpop.f32.mrf.mxu0
  %v222 = vadd.f32 %v39, %v221
  %v223 = vpop.f32.mrf.mxu0
  %224 = vmatprep.mubr.f32.mxu0 0.0
  %225 = vmatmul.mubr.f32.gmra.mxu0 %v85
  %v226 = vpop.f32.mrf.mxu0
  %v227 = vadd.f32 %v39, %v226
  %v228 = vpop.f32.mrf.mxu0
  %229 = vmatprep.mubr.f32.mxu0 0.0
  %230 = vmatmul.mubr.f32.gmra.mxu0 %v88
  %v231 = vpop.f32.mrf.mxu0
  %v232 = vadd.f32 %v39, %v231
  %v233 = vpop.f32.mrf.mxu0
  %234 = vdwg.mxu0
  %vm235 = vcmask 23552
  %236 = vst.msk [vmem:[%s3] sm:$0xff] %vm235, %v157
  %237 = vst.msk [vmem:[%s3 + $0x8] sm:$0xff] %vm235, %v162
  %238 = vst.msk [vmem:[%s3 + $0x10] sm:$0xff] %vm235, %v167
  %239 = vst.msk [vmem:[%s3 + $0x18] sm:$0xff] %vm235, %v172
  %240 = vst.msk [vmem:[%s3 + $0x20] sm:$0xff] %vm235, %v177
  %241 = vst.msk [vmem:[%s3 + $0x28] sm:$0xff] %vm235, %v182
  %242 = vst.msk [vmem:[%s3 + $0x30] sm:$0xff] %vm235, %v187
  %243 = vst.msk [vmem:[%s3 + $0x38] sm:$0xff] %vm235, %v192
  %244 = vst.msk [vmem:[%s3 + $0x40] sm:$0xff] %vm235, %v197
  %245 = vst.msk [vmem:[%s3 + $0x48] sm:$0xff] %vm235, %v202
  %246 = vst.msk [vmem:[%s3 + $0x50] sm:$0xff] %vm235, %v207
  %247 = vst.msk [vmem:[%s3 + $0x58] sm:$0xff] %vm235, %v212
  %248 = vst.msk [vmem:[%s3 + $0x60] sm:$0xff] %vm235, %v217
  %249 = vst.msk [vmem:[%s3 + $0x68] sm:$0xff] %vm235, %v222
  %250 = vst.msk [vmem:[%s3 + $0x70] sm:$0xff] %vm235, %v227
  %251 = vst.msk [vmem:[%s3 + $0x78] sm:$0xff] %vm235, %v232
  // Predicated region
  $region14: #{lstm_forward.5} parent=0 // pred_check
    _
  $region15: #{lstm_forward.5} parent=0 // pred_check_branch
    %253 = sbr.rel (0) target = $region17
  $region16: #{lstm_forward.5} parent=0 // pred_region
    _
  $region17: #{lstm_forward.5} parent=0 // pred_fallthru
    _
  // Predicated region
  $region18: #{lstm_forward.5} parent=0 // pred_check
    _
  $region19: #{lstm_forward.5} parent=0 // pred_check_branch
    %255 = sbr.rel (0) target = $region21
  $region20: #{lstm_forward.5} parent=0 // pred_region
    _
  $region21: #{lstm_forward.5} parent=0 // pred_fallthru
    _

// kernel: lstm_forward.3
$region0: #{lstm_forward.3}
  #allocation0 [shape = 'u32[]', space=smem, size = 0x4, offset = 0x4, fixed_abs, tag = 'smem constant byte address 0x4 - core index']
  #allocation1 [shape = 'u32[144,128]{1,0:T(1,128)}', space=vmem, size = 0x12000, scoped, tag = 'internal scratch']
  %s0 = inlined_call_operand.vmem [shape: f32[128,4], index: 0, kind: input, shape index: {}]
  %s1 = inlined_call_operand.vmem [shape: f32[4,128], index: 1, kind: input, shape index: {}]
  %s2 = inlined_call_operand.vmem [shape: f32[1,128], index: 2, kind: input, shape index: {}]
  %s3 = inlined_call_operand.vmem [shape: f32[128,128], index: 3, kind: output, shape index: {}]
  %s4 = sld [smem:[#allocation0]]
  $region22: #{lstm_forward.3} parent=0
    _
  %s6 = ssub.s32 1, %s4
  %s7 = scalar_select 0, %s6, %s4
  // Predicated region
  $region2: #{lstm_forward.3} parent=0 // pred_check
    _
  $region3: #{lstm_forward.3} parent=0 // pred_check_branch
    %9 = sbr.rel (0) target = $region5
  $region4: #{lstm_forward.3} parent=0 // pred_region
    _
  $region5: #{lstm_forward.3} parent=0 // pred_fallthru
    _
  // Predicated region
  $region6: #{lstm_forward.3} parent=0 // pred_check
    _
  $region7: #{lstm_forward.3} parent=0 // pred_check_branch
    %11 = sbr.rel (0) target = $region9
  $region8: #{lstm_forward.3} parent=0 // pred_region
    _
  $region9: #{lstm_forward.3} parent=0 // pred_fallthru
    _
  // Predicated region
  $region10: #{lstm_forward.3} parent=0 // pred_check
    _
  $region11: #{lstm_forward.3} parent=0 // pred_check_branch
    %13 = sbr.rel (0) target = $region13
  $region12: #{lstm_forward.3} parent=0 // pred_region
    _
  $region13: #{lstm_forward.3} parent=0 // pred_fallthru
    _
  %v14 = vld [vmem:[%s0] sm:$0xff]
  %v15 = vld [vmem:[%s0 + $0x8] sm:$0xff]
  %v16 = vld [vmem:[%s0 + $0x10] sm:$0xff]
  %v17 = vld [vmem:[%s0 + $0x18] sm:$0xff]
  %v18 = vld [vmem:[%s0 + $0x20] sm:$0xff]
  %v19 = vld [vmem:[%s0 + $0x28] sm:$0xff]
  %v20 = vld [vmem:[%s0 + $0x30] sm:$0xff]
  %v21 = vld [vmem:[%s0 + $0x38] sm:$0xff]
  %v22 = vld [vmem:[%s0 + $0x40] sm:$0xff]
  %v23 = vld [vmem:[%s0 + $0x48] sm:$0xff]
  %v24 = vld [vmem:[%s0 + $0x50] sm:$0xff]
  %v25 = vld [vmem:[%s0 + $0x58] sm:$0xff]
  %v26 = vld [vmem:[%s0 + $0x60] sm:$0xff]
  %v27 = vld [vmem:[%s0 + $0x68] sm:$0xff]
  %v28 = vld [vmem:[%s0 + $0x70] sm:$0xff]
  %v29 = vld [vmem:[%s0 + $0x78] sm:$0xff]
  %v30 = vld [vmem:[%s1] sm:$0xf]
  %v31 = vld [vmem:[%s2] sm:$0x1]
  %v33 = vlaneseq
  %v34 = vshrl.u32 %v33, 7
  %v35 = vsub.s32 0, %v34
  %v36 = vrot.slane %v31, %v35
  %vm38 = vcmask 31744
  %v40 = vsel %vm38, %v14, 0
  %v43 = vsel %vm38, %v15, 0
  %v46 = vsel %vm38, %v16, 0
  %v49 = vsel %vm38, %v17, 0
  %v52 = vsel %vm38, %v18, 0
  %v55 = vsel %vm38, %v19, 0
  %v58 = vsel %vm38, %v20, 0
  %v61 = vsel %vm38, %v21, 0
  %v64 = vsel %vm38, %v22, 0
  %v67 = vsel %vm38, %v23, 0
  %v70 = vsel %vm38, %v24, 0
  %v73 = vsel %vm38, %v25, 0
  %v76 = vsel %vm38, %v26, 0
  %v79 = vsel %vm38, %v27, 0
  %v82 = vsel %vm38, %v28, 0
  %v85 = vsel %vm38, %v29, 0
  %vm87 = vcmask 1043456
  %v89 = vsel %vm87, %v30, 0
  %91 = vmatprep.subr.mxu0 0.0
  %92 = vmatpush1.msra.mxu0 0.0
  %93 = vmatprep.subr.mxu0 0.0
  %94 = vmatpush1.msra.mxu0 0.0
  %95 = vmatprep.subr.mxu0 0.0
  %96 = vmatpush1.msra.mxu0 0.0
  %97 = vmatprep.subr.mxu0 0.0
  %98 = vmatpush1.msra.mxu0 0.0
  %99 = vmatprep.subr.mxu0 0.0
  %100 = vmatpush1.msra.mxu0 0.0
  %101 = vmatprep.subr.mxu0 0.0
  %102 = vmatpush1.msra.mxu0 0.0
  %103 = vmatprep.subr.mxu0 0.0
  %104 = vmatpush1.msra.mxu0 0.0
  %105 = vmatprep.subr.mxu0 0.0
  %106 = vmatpush1.msra.mxu0 0.0
  %107 = vmatprep.subr.mxu0 0.0
  %108 = vmatpush1.msra.mxu0 0.0
  %109 = vmatprep.subr.mxu0 0.0
  %110 = vmatpush1.msra.mxu0 0.0
  %111 = vmatprep.subr.mxu0 0.0
  %112 = vmatpush1.msra.mxu0 0.0
  %113 = vmatprep.subr.mxu0 0.0
  %114 = vmatpush1.msra.mxu0 0.0
  %115 = vmatprep.subr.mxu0 0.0
  %116 = vmatpush1.msra.mxu0 0.0
  %117 = vmatprep.subr.mxu0 0.0
  %118 = vmatpush1.msra.mxu0 0.0
  %119 = vmatprep.subr.mxu0 0.0
  %120 = vmatpush1.msra.mxu0 0.0
  %121 = vmatprep.subr.mxu0 0.0
  %122 = vmatpush1.msra.mxu0 %v89
  %123 = vmatprep.subr.mxu0 0.0
  %124 = vmatpush2.msra.mxu0 0.0
  %125 = vmatprep.subr.mxu0 0.0
  %126 = vmatpush2.msra.mxu0 0.0
  %127 = vmatprep.subr.mxu0 0.0
  %128 = vmatpush2.msra.mxu0 0.0
  %129 = vmatprep.subr.mxu0 0.0
  %130 = vmatpush2.msra.mxu0 0.0
  %131 = vmatprep.subr.mxu0 0.0
  %132 = vmatpush2.msra.mxu0 0.0
  %133 = vmatprep.subr.mxu0 0.0
  %134 = vmatpush2.msra.mxu0 0.0
  %135 = vmatprep.subr.mxu0 0.0
  %136 = vmatpush2.msra.mxu0 0.0
  %137 = vmatprep.subr.mxu0 0.0
  %138 = vmatpush2.msra.mxu0 0.0
  %139 = vmatprep.subr.mxu0 0.0
  %140 = vmatpush2.msra.mxu0 0.0
  %141 = vmatprep.subr.mxu0 0.0
  %142 = vmatpush2.msra.mxu0 0.0
  %143 = vmatprep.subr.mxu0 0.0
  %144 = vmatpush2.msra.mxu0 0.0
  %145 = vmatprep.subr.mxu0 0.0
  %146 = vmatpush2.msra.mxu0 0.0
  %147 = vmatprep.subr.mxu0 0.0
  %148 = vmatpush2.msra.mxu0 0.0
  %149 = vmatprep.subr.mxu0 0.0
  %150 = vmatpush2.msra.mxu0 0.0
  %151 = vmatprep.subr.mxu0 0.0
  %152 = vmatpush2.msra.mxu0 0.0
  %153 = vmatprep.subr.mxu0 0.0
  %154 = vmatpush2.msra.mxu0 0.0
  %155 = vmatprep.mubr.f32.mxu0 0.0
  %156 = vmatmul.mubr.f32.gmra.mxu0 %v40
  %v157 = vpop.f32.mrf.mxu0
  %v158 = vadd.f32 %v36, %v157
  %v159 = vpop.f32.mrf.mxu0
  %160 = vmatprep.mubr.f32.mxu0 0.0
  %161 = vmatmul.mubr.f32.gmra.mxu0 %v43
  %v162 = vpop.f32.mrf.mxu0
  %v163 = vadd.f32 %v36, %v162
  %v164 = vpop.f32.mrf.mxu0
  %165 = vmatprep.mubr.f32.mxu0 0.0
  %166 = vmatmul.mubr.f32.gmra.mxu0 %v46
  %v167 = vpop.f32.mrf.mxu0
  %v168 = vadd.f32 %v36, %v167
  %v169 = vpop.f32.mrf.mxu0
  %170 = vmatprep.mubr.f32.mxu0 0.0
  %171 = vmatmul.mubr.f32.gmra.mxu0 %v49
  %v172 = vpop.f32.mrf.mxu0
  %v173 = vadd.f32 %v36, %v172
  %v174 = vpop.f32.mrf.mxu0
  %175 = vmatprep.mubr.f32.mxu0 0.0
  %176 = vmatmul.mubr.f32.gmra.mxu0 %v52
  %v177 = vpop.f32.mrf.mxu0
  %v178 = vadd.f32 %v36, %v177
  %v179 = vpop.f32.mrf.mxu0
  %180 = vmatprep.mubr.f32.mxu0 0.0
  %181 = vmatmul.mubr.f32.gmra.mxu0 %v55
  %v182 = vpop.f32.mrf.mxu0
  %v183 = vadd.f32 %v36, %v182
  %v184 = vpop.f32.mrf.mxu0
  %185 = vmatprep.mubr.f32.mxu0 0.0
  %186 = vmatmul.mubr.f32.gmra.mxu0 %v58
  %v187 = vpop.f32.mrf.mxu0
  %v188 = vadd.f32 %v36, %v187
  %v189 = vpop.f32.mrf.mxu0
  %190 = vmatprep.mubr.f32.mxu0 0.0
  %191 = vmatmul.mubr.f32.gmra.mxu0 %v61
  %v192 = vpop.f32.mrf.mxu0
  %v193 = vadd.f32 %v36, %v192
  %v194 = vpop.f32.mrf.mxu0
  %195 = vmatprep.mubr.f32.mxu0 0.0
  %196 = vmatmul.mubr.f32.gmra.mxu0 %v64
  %v197 = vpop.f32.mrf.mxu0
  %v198 = vadd.f32 %v36, %v197
  %v199 = vpop.f32.mrf.mxu0
  %200 = vmatprep.mubr.f32.mxu0 0.0
  %201 = vmatmul.mubr.f32.gmra.mxu0 %v67
  %v202 = vpop.f32.mrf.mxu0
  %v203 = vadd.f32 %v36, %v202
  %v204 = vpop.f32.mrf.mxu0
  %205 = vmatprep.mubr.f32.mxu0 0.0
  %206 = vmatmul.mubr.f32.gmra.mxu0 %v70
  %v207 = vpop.f32.mrf.mxu0
  %v208 = vadd.f32 %v36, %v207
  %v209 = vpop.f32.mrf.mxu0
  %210 = vmatprep.mubr.f32.mxu0 0.0
  %211 = vmatmul.mubr.f32.gmra.mxu0 %v73
  %v212 = vpop.f32.mrf.mxu0
  %v213 = vadd.f32 %v36, %v212
  %v214 = vpop.f32.mrf.mxu0
  %215 = vmatprep.mubr.f32.mxu0 0.0
  %216 = vmatmul.mubr.f32.gmra.mxu0 %v76
  %v217 = vpop.f32.mrf.mxu0
  %v218 = vadd.f32 %v36, %v217
  %v219 = vpop.f32.mrf.mxu0
  %220 = vmatprep.mubr.f32.mxu0 0.0
  %221 = vmatmul.mubr.f32.gmra.mxu0 %v79
  %v222 = vpop.f32.mrf.mxu0
  %v223 = vadd.f32 %v36, %v222
  %v224 = vpop.f32.mrf.mxu0
  %225 = vmatprep.mubr.f32.mxu0 0.0
  %226 = vmatmul.mubr.f32.gmra.mxu0 %v82
  %v227 = vpop.f32.mrf.mxu0
  %v228 = vadd.f32 %v36, %v227
  %v229 = vpop.f32.mrf.mxu0
  %230 = vmatprep.mubr.f32.mxu0 0.0
  %231 = vmatmul.mubr.f32.gmra.mxu0 %v85
  %v232 = vpop.f32.mrf.mxu0
  %v233 = vadd.f32 %v36, %v232
  %v234 = vpop.f32.mrf.mxu0
  %235 = vdwg.mxu0
  %236 = vst [vmem:[%s3] sm:$0xff] %v158
  %237 = vst [vmem:[%s3 + $0x8] sm:$0xff] %v163
  %238 = vst [vmem:[%s3 + $0x10] sm:$0xff] %v168
  %239 = vst [vmem:[%s3 + $0x18] sm:$0xff] %v173
  %240 = vst [vmem:[%s3 + $0x20] sm:$0xff] %v178
  %241 = vst [vmem:[%s3 + $0x28] sm:$0xff] %v183
  %242 = vst [vmem:[%s3 + $0x30] sm:$0xff] %v188
  %243 = vst [vmem:[%s3 + $0x38] sm:$0xff] %v193
  %244 = vst [vmem:[%s3 + $0x40] sm:$0xff] %v198
  %245 = vst [vmem:[%s3 + $0x48] sm:$0xff] %v203
  %246 = vst [vmem:[%s3 + $0x50] sm:$0xff] %v208
  %247 = vst [vmem:[%s3 + $0x58] sm:$0xff] %v213
  %248 = vst [vmem:[%s3 + $0x60] sm:$0xff] %v218
  %249 = vst [vmem:[%s3 + $0x68] sm:$0xff] %v223
  %250 = vst [vmem:[%s3 + $0x70] sm:$0xff] %v228
  %251 = vst [vmem:[%s3 + $0x78] sm:$0xff] %v233
  // Predicated region
  $region14: #{lstm_forward.3} parent=0 // pred_check
    _
  $region15: #{lstm_forward.3} parent=0 // pred_check_branch
    %253 = sbr.rel (0) target = $region17
  $region16: #{lstm_forward.3} parent=0 // pred_region
    _
  $region17: #{lstm_forward.3} parent=0 // pred_fallthru
    _
  // Predicated region
  $region18: #{lstm_forward.3} parent=0 // pred_check
    _
  $region19: #{lstm_forward.3} parent=0 // pred_check_branch
    %255 = sbr.rel (0) target = $region21
  $region20: #{lstm_forward.3} parent=0 // pred_region
    _
  $region21: #{lstm_forward.3} parent=0 // pred_fallthru
    _

// kernel: lstm_forward.4
$region0: #{lstm_forward.4}
  #allocation0 [shape = 'u32[]', space=smem, size = 0x4, offset = 0x4, fixed_abs, tag = 'smem constant byte address 0x4 - core index']
  #allocation1 [shape = 'u32[144,128]{1,0:T(1,128)}', space=vmem, size = 0x12000, scoped, tag = 'internal scratch']
  #allocation2 [shape = 'f32[2,32]{1,0:T(2,128)}', space=vmem, size = 0x400, scoped, tag = 'scratch operand']
  #allocation3 [shape = 'f32[2,32]{1,0:T(2,128)}', space=vmem, size = 0x400, scoped, tag = 'scratch operand']
  %s0 = inlined_call_operand.vmem [shape: f32[8,2,128], index: 0, kind: input, shape index: {}]
  %s1 = inlined_call_operand.vmem [shape: f32[32,128], index: 1, kind: input, shape index: {}]
  %s2 = inlined_call_operand.vmem [shape: f32[8,2,32], index: 2, kind: output, shape index: {}]
  %s3 = sld [smem:[#allocation0]]
  $region45: #{lstm_forward.4} parent=0
    _
  %s5 = ssub.s32 1, %s3
  %s6 = scalar_select 0, %s5, %s3
  loop: start=0, step=1, limit=4
  $region2: #{lstm_forward.4} parent=0 // loop_pre_header
    _
  $region3: #{lstm_forward.4} parent=0 // loop_header
    %s8 = sphi 0, %s12
    %p9 = scmp.ge.s32.totalorder %s8, 4
    %s15 = sphi 0, %s27
    %s16 = sphi 0, %s23
    %s17 = sphi 0, %s15
    %s18 = sphi 0, %s16
    %s19 = sphi 0, %s17
    %s20 = sphi 0, %s18
    %s32 = sphi 0, %s34
    %s35 = sphi 0, %s32
    %s36 = sphi 0, %s35
    %s52 = sphi 0, %s36
    %s56 = sphi 0, %s56
    %s58 = sphi 0, %s56
    %s59 = sphi 0, %s58
    %s73 = sphi 0, %s59
    %s81 = sphi 0, %s83
    %s84 = sphi 0, %s81
    %s85 = sphi 0, %s84
    %s101 = sphi 0, %s85
  $region4: #{lstm_forward.4} parent=0 // loop_header_branch
    %11 = sbr.rel (%p9) target = $region8
  $region5: #{lstm_forward.4} parent=0 // loop_body
    %s13 = ssub.s32 %s8, 1
    %s14 = ssub.s32 %s8, 2
    %s21 = sadd.s32 1, %s16
    %p22 = scmp.ge.s32.totalorder %s21, 2
    %s23 = scalar_select %p22, 0, %s21
    %s24 = sadd.s32 1, %s15
    %s25 = scalar_select %p22, %s24, %s15
    %p26 = scmp.ge.s32.totalorder %s25, 1
    %s27 = scalar_select %p26, 0, %s25
    %s28 = ssub.s32 %s16, %s23
    %s29 = ssub.s32 %s15, %s27
    %s30 = sor.u32 %s28, %s29
    %p31 = scmp.eq.s32.totalorder %s30, 0
    %s33 = sadd.s32 %s32, 1
    %s34 = scalar_select %p31, %s32, %s33
    %p37 = pneg %p31
    %p38 = scmp.eq.s32.totalorder %s8, 1
    %p39 = por %p37, %p38
    %p40 = scmp.ne.s32.totalorder %s32, %s35
    %p41 = scmp.eq.s32.totalorder %s8, 0
    %p42 = por %p40, %p41
    %p43 = scmp.ne.s32.totalorder %s32, %s35
    %p44 = scmp.eq.s32.totalorder %s13, 1
    %p45 = por %p43, %p44
    %p46 = scmp.ne.s32.totalorder %s35, %s36
    %p47 = scmp.eq.s32.totalorder %s13, 0
    %p48 = por %p46, %p47
    %p49 = scmp.ne.s32.totalorder %s35, %s36
    %p50 = scmp.eq.s32.totalorder %s14, 1
    %p51 = por %p49, %p50
    %p53 = scmp.ne.s32.totalorder %s36, %s52
    %p54 = scmp.eq.s32.totalorder %s14, 0
    %p55 = por %p53, %p54
    %s57 = sadd.s32 %s56, 1
    %p60 = scmp.eq.s32.totalorder %s8, 1
    %p61 = scmp.ne.s32.totalorder %s56, %s58
    %p62 = scmp.eq.s32.totalorder %s8, 0
    %p63 = por %p61, %p62
    %p64 = scmp.ne.s32.totalorder %s56, %s58
    %p65 = scmp.eq.s32.totalorder %s13, 1
    %p66 = por %p64, %p65
    %p67 = scmp.ne.s32.totalorder %s58, %s59
    %p68 = scmp.eq.s32.totalorder %s13, 0
    %p69 = por %p67, %p68
    %p70 = scmp.ne.s32.totalorder %s58, %s59
    %p71 = scmp.eq.s32.totalorder %s14, 1
    %p72 = por %p70, %p71
    %p74 = scmp.ne.s32.totalorder %s59, %s73
    %p75 = scmp.eq.s32.totalorder %s14, 0
    %p76 = por %p74, %p75
    %s77 = ssub.s32 %s16, %s23
    %s78 = ssub.s32 %s15, %s27
    %s79 = sor.u32 %s77, %s78
    %p80 = scmp.eq.s32.totalorder %s79, 0
    %s82 = sadd.s32 %s81, 1
    %s83 = scalar_select %p80, %s81, %s82
    %p86 = pneg %p80
    %p87 = scmp.eq.s32.totalorder %s8, 1
    %p88 = por %p86, %p87
    %p89 = scmp.ne.s32.totalorder %s81, %s84
    %p90 = scmp.eq.s32.totalorder %s8, 0
    %p91 = por %p89, %p90
    %p92 = scmp.ne.s32.totalorder %s81, %s84
    %p93 = scmp.eq.s32.totalorder %s13, 1
    %p94 = por %p92, %p93
    %p95 = scmp.ne.s32.totalorder %s84, %s85
    %p96 = scmp.eq.s32.totalorder %s13, 0
    %p97 = por %p95, %p96
    %p98 = scmp.ne.s32.totalorder %s84, %s85
    %p99 = scmp.eq.s32.totalorder %s14, 1
    %p100 = por %p98, %p99
    %p102 = scmp.ne.s32.totalorder %s85, %s101
    %p103 = scmp.eq.s32.totalorder %s14, 0
    %p104 = por %p102, %p103
    %p105 = scmp.le.s32.totalorder 1, %s8
    %p106 = scmp.lt.s32.totalorder %s8, 3
    %p107 = pnand %p105, %p106
    %p108 = pneg %p107
    // Predicated region
    $region9: #{lstm_forward.4} parent=5 // pred_check
      _
    $region10: #{lstm_forward.4} parent=5 // pred_check_branch
      %110 = sbr.rel (%p107) target = $region12
    $region11: #{lstm_forward.4} parent=5 // pred_region
      %s111 = ssub.s32 %s8, 1
      // Predicated region
      $region13: #{lstm_forward.4} parent=11 // pred_check
        %p112 = pneg %p69
      $region14: #{lstm_forward.4} parent=11 // pred_check_branch
        %114 = sbr.rel (%p112) target = $region16
      $region15: #{lstm_forward.4} parent=11 // pred_region
        _
      $region16: #{lstm_forward.4} parent=11 // pred_fallthru
        _
    $region12: #{lstm_forward.4} parent=5 // pred_fallthru
      _
    %p115 = scmp.lt.s32.totalorder %s8, 2
    // Predicated region
    $region17: #{lstm_forward.4} parent=5 // pred_check
      %p116 = pneg %p115
    $region18: #{lstm_forward.4} parent=5 // pred_check_branch
      %118 = sbr.rel (%p116) target = $region20
    $region19: #{lstm_forward.4} parent=5 // pred_region
      // Predicated region
      $region21: #{lstm_forward.4} parent=19 // pred_check
        %p119 = pneg %p42
      $region22: #{lstm_forward.4} parent=19 // pred_check_branch
        %121 = sbr.rel (%p119) target = $region24
      $region23: #{lstm_forward.4} parent=19 // pred_region
        %s122 = smul.u32 4, %s16
        %p123 = scmp.lt.s32.totalorder %s122, 7
        %s124 = scalar_select %p123, %s122, 7
        %p125 = scmp.lt.s32.totalorder %s15, 0
        %s126 = scalar_select %p125, %s15, 0
        %s127 = sadd.s32 %s126, %s124
        %s128 = smul.addr %s127, 2
        %s129 = scalar_lea.vmem %s0, %s128
        %s130 = smul.u32 4, %s16
      $region24: #{lstm_forward.4} parent=19 // pred_fallthru
        _
    $region20: #{lstm_forward.4} parent=5 // pred_fallthru
      _
    %p131 = scmp.le.s32.totalorder 1, %s8
    %p132 = scmp.lt.s32.totalorder %s8, 3
    %p133 = pnand %p131, %p132
    %p134 = pneg %p133
    // Predicated region
    $region25: #{lstm_forward.4} parent=5 // pred_check
      _
    $region26: #{lstm_forward.4} parent=5 // pred_check_branch
      %136 = sbr.rel (%p133) target = $region28
    $region27: #{lstm_forward.4} parent=5 // pred_region
      %s137 = ssub.s32 %s8, 1
      %s138 = smul.u32 4, %s18
      %p139 = scmp.lt.s32.totalorder %s138, 7
      %s140 = scalar_select %p139, %s138, 7
      %p141 = scmp.lt.s32.totalorder %s17, 0
      %s142 = scalar_select %p141, %s17, 0
      %s143 = sadd.s32 %s142, %s140
      %s144 = smul.addr %s143, 2
      %s145 = scalar_lea.vmem %s0, %s144
      %p146 = pneg %p48
      %p147 = pneg %p45
      %p148 = pneg %p69
      %p149 = pneg %p66
      %p150 = pneg %p97
      %p151 = pneg %p94
      %s152 = smul.u32 4, %s18
      %p153 = scmp.lt.s32.totalorder %s152, 7
      %s154 = scalar_select %p153, %s152, 7
      %p155 = scmp.lt.s32.totalorder %s17, 0
      %s156 = scalar_select %p155, %s17, 0
      %s157 = sadd.s32 %s156, %s154
      %s158 = smul.addr %s157, 2
      %s159 = scalar_lea.vmem %s2, %s158
      %s160 = smul.u32 4, %s18
      %p161 = scmp.lt.s32.totalorder %s160, 7
      %s162 = scalar_select %p161, %s160, 7
      %p163 = scmp.lt.s32.totalorder %s17, 0
      %s164 = scalar_select %p163, %s17, 0
      %s165 = sadd.s32 %s164, %s162
      %s166 = smul.addr %s165, 2
      %s167 = scalar_lea.vmem %s0, %s166
      %s168 = smul.u32 4, %s18
      %s169 = smul.u32 4, %s18
      %p170 = scmp.lt.s32.totalorder %s169, 7
      %s171 = scalar_select %p170, %s169, 7
      %p172 = scmp.lt.s32.totalorder %s17, 0
      %s173 = scalar_select %p172, %s17, 0
      %s174 = sadd.s32 %s173, %s171
      %s175 = smul.addr %s174, 2
      %s176 = scalar_lea.vmem %s2, %s175
      %s177 = smul.u32 4, %s18
      %p178 = scmp.eq.s32.totalorder %s18, 0
      // Predicated region
      $region29: #{lstm_forward.4} parent=27 // pred_check
        %p179 = pneg %p178
      $region30: #{lstm_forward.4} parent=27 // pred_check_branch
        %181 = sbr.rel (%p179) target = $region32
      $region31: #{lstm_forward.4} parent=27 // pred_region
        %vm182 = vcmask 254976
        %183 = vst.msk [vmem:[#allocation2] sm:$0x3] %vm182, 0.0
        %184 = vst.msk [vmem:[#allocation3] sm:$0x3] %vm182, 0.0
      $region32: #{lstm_forward.4} parent=27 // pred_fallthru
        _
      %v185 = vld [vmem:[%s1] sm:$0xff]
      %v186 = vld [vmem:[%s1 + $0x8] sm:$0xff]
      %v187 = vld [vmem:[%s1 + $0x10] sm:$0xff]
      %v188 = vld [vmem:[%s1 + $0x18] sm:$0xff]
      %v189 = vld [vmem:[#allocation2] sm:$0x3]
      %v190 = vld [vmem:[#allocation3] sm:$0x3]
      %v191 = vld [vmem:[%s167] sm:$0x3]
      %vm192 = vcmask 261120
      %v194 = vsel %vm192, %v189, 0
      %196 = vmatprep.subr.mxu0 0.0
      %197 = vmatpush1.msra.mxu0 0.0
      %198 = vmatprep.subr.mxu0 0.0
      %199 = vmatpush1.msra.mxu0 0.0
      %200 = vmatprep.subr.mxu0 0.0
      %201 = vmatpush1.msra.mxu0 0.0
      %202 = vmatprep.subr.mxu0 0.0
      %203 = vmatpush1.msra.mxu0 0.0
      %204 = vmatprep.subr.mxu0 0.0
      %205 = vmatpush1.msra.mxu0 0.0
      %206 = vmatprep.subr.mxu0 0.0
      %207 = vmatpush1.msra.mxu0 0.0
      %208 = vmatprep.subr.mxu0 0.0
      %209 = vmatpush1.msra.mxu0 0.0
      %210 = vmatprep.subr.mxu0 0.0
      %211 = vmatpush1.msra.mxu0 0.0
      %212 = vmatprep.subr.mxu0 0.0
      %213 = vmatpush1.msra.mxu0 0.0
      %214 = vmatprep.subr.mxu0 0.0
      %215 = vmatpush1.msra.mxu0 0.0
      %216 = vmatprep.subr.mxu0 0.0
      %217 = vmatpush1.msra.mxu0 0.0
      %218 = vmatprep.subr.mxu0 0.0
      %219 = vmatpush1.msra.mxu0 0.0
      %220 = vmatprep.subr.mxu0 0.0
      %221 = vmatpush1.msra.mxu0 %v188
      %222 = vmatprep.subr.mxu0 0.0
      %223 = vmatpush1.msra.mxu0 %v187
      %224 = vmatprep.subr.mxu0 0.0
      %225 = vmatpush1.msra.mxu0 %v186
      %226 = vmatprep.subr.mxu0 0.0
      %227 = vmatpush1.msra.mxu0 %v185
      %228 = vmatprep.subr.mxu0 0.0
      %229 = vmatpush2.msra.mxu0 0.0
      %230 = vmatprep.subr.mxu0 0.0
      %231 = vmatpush2.msra.mxu0 0.0
      %232 = vmatprep.subr.mxu0 0.0
      %233 = vmatpush2.msra.mxu0 0.0
      %234 = vmatprep.subr.mxu0 0.0
      %235 = vmatpush2.msra.mxu0 0.0
      %236 = vmatprep.subr.mxu0 0.0
      %237 = vmatpush2.msra.mxu0 0.0
      %238 = vmatprep.subr.mxu0 0.0
      %239 = vmatpush2.msra.mxu0 0.0
      %240 = vmatprep.subr.mxu0 0.0
      %241 = vmatpush2.msra.mxu0 0.0
      %242 = vmatprep.subr.mxu0 0.0
      %243 = vmatpush2.msra.mxu0 0.0
      %244 = vmatprep.subr.mxu0 0.0
      %245 = vmatpush2.msra.mxu0 0.0
      %246 = vmatprep.subr.mxu0 0.0
      %247 = vmatpush2.msra.mxu0 0.0
      %248 = vmatprep.subr.mxu0 0.0
      %249 = vmatpush2.msra.mxu0 0.0
      %250 = vmatprep.subr.mxu0 0.0
      %251 = vmatpush2.msra.mxu0 0.0
      %252 = vmatprep.subr.mxu0 0.0
      %253 = vmatpush2.msra.mxu0 0.0
      %254 = vmatprep.subr.mxu0 0.0
      %255 = vmatpush2.msra.mxu0 0.0
      %256 = vmatprep.subr.mxu0 0.0
      %257 = vmatpush2.msra.mxu0 0.0
      %258 = vmatprep.subr.mxu0 0.0
      %259 = vmatpush2.msra.mxu0 0.0
      %260 = vmatprep.mubr.f32.mxu0 0.0
      %261 = vmatmul.mubr.f32.gmra.mxu0 %v194
      %v262 = vpop.f32.mrf.mxu0
      %v263 = vadd.f32 0.0, %v262
      %v264 = vpop.f32.mrf.mxu0
      %265 = vdwg.mxu0
      %v266 = vadd.f32 %v191, %v263
      %v267 = vxor.u32 %v266, 2147483648
      %v268 = vmul.f32 %v267, 1.442695
      %v269 = vpow.pop %v268
      %v270 = vadd.f32 %v269, 1.0
      %v271 = vrcp.pop %v270
      %v272 = vmul.f32 1.0, %v271
      %v273 = vtanh.pop %v266
      %275 = vrot.lane.b32.xlu0 %v190, 32
      %v276 = vpop.permute.xlu0 %275
      %v278 = vmul.f32 %v272, %v276
      %280 = vrot.lane.b32.xlu0 %v273, 64
      %v281 = vpop.permute.xlu0 %280
      %v283 = vmul.f32 %v272, %v281
      %285 = vrot.lane.b32.xlu0 %v283, 32
      %v286 = vpop.permute.xlu0 %285
      %v288 = vadd.f32 %v278, %v286
      %v289 = vtanh.pop %v288
      %291 = vrot.lane.b32.xlu0 %v289, 64
      %v292 = vpop.permute.xlu0 %291
      %v294 = vmul.f32 %v272, %v292
      %296 = vrot.lane.b32.xlu0 %v294, 32
      %v297 = vpop.permute.xlu0 %296
      %vm299 = vcmask 254976
      %300 = vst.msk [vmem:[%s176] sm:$0x3] %vm299, %v297
      %s301 = scalar_lea.vmem %s167, 2
      %v302 = vld [vmem:[%s301] sm:$0x3]
      %v303 = vsel %vm192, %v297, 0
      %305 = vmatprep.subr.mxu0 0.0
      %306 = vmatpush1.msra.mxu0 0.0
      %307 = vmatprep.subr.mxu0 0.0
      %308 = vmatpush1.msra.mxu0 0.0
      %309 = vmatprep.subr.mxu0 0.0
      %310 = vmatpush1.msra.mxu0 0.0
      %311 = vmatprep.subr.mxu0 0.0
      %312 = vmatpush1.msra.mxu0 0.0
      %313 = vmatprep.subr.mxu0 0.0
      %314 = vmatpush1.msra.mxu0 0.0
      %315 = vmatprep.subr.mxu0 0.0
      %316 = vmatpush1.msra.mxu0 0.0
      %317 = vmatprep.subr.mxu0 0.0
      %318 = vmatpush1.msra.mxu0 0.0
      %319 = vmatprep.subr.mxu0 0.0
      %320 = vmatpush1.msra.mxu0 0.0
      %321 = vmatprep.subr.mxu0 0.0
      %322 = vmatpush1.msra.mxu0 0.0
      %323 = vmatprep.subr.mxu0 0.0
      %324 = vmatpush1.msra.mxu0 0.0
      %325 = vmatprep.subr.mxu0 0.0
      %326 = vmatpush1.msra.mxu0 0.0
      %327 = vmatprep.subr.mxu0 0.0
      %328 = vmatpush1.msra.mxu0 0.0
      %329 = vmatprep.subr.mxu0 0.0
      %330 = vmatpush1.msra.mxu0 %v188
      %331 = vmatprep.subr.mxu0 0.0
      %332 = vmatpush1.msra.mxu0 %v187
      %333 = vmatprep.subr.mxu0 0.0
      %334 = vmatpush1.msra.mxu0 %v186
      %335 = vmatprep.subr.mxu0 0.0
      %336 = vmatpush1.msra.mxu0 %v185
      %337 = vmatprep.subr.mxu0 0.0
      %338 = vmatpush2.msra.mxu0 0.0
      %339 = vmatprep.subr.mxu0 0.0
      %340 = vmatpush2.msra.mxu0 0.0
      %341 = vmatprep.subr.mxu0 0.0
      %342 = vmatpush2.msra.mxu0 0.0
      %343 = vmatprep.subr.mxu0 0.0
      %344 = vmatpush2.msra.mxu0 0.0
      %345 = vmatprep.subr.mxu0 0.0
      %346 = vmatpush2.msra.mxu0 0.0
      %347 = vmatprep.subr.mxu0 0.0
      %348 = vmatpush2.msra.mxu0 0.0
      %349 = vmatprep.subr.mxu0 0.0
      %350 = vmatpush2.msra.mxu0 0.0
      %351 = vmatprep.subr.mxu0 0.0
      %352 = vmatpush2.msra.mxu0 0.0
      %353 = vmatprep.subr.mxu0 0.0
      %354 = vmatpush2.msra.mxu0 0.0
      %355 = vmatprep.subr.mxu0 0.0
      %356 = vmatpush2.msra.mxu0 0.0
      %357 = vmatprep.subr.mxu0 0.0
      %358 = vmatpush2.msra.mxu0 0.0
      %359 = vmatprep.subr.mxu0 0.0
      %360 = vmatpush2.msra.mxu0 0.0
      %361 = vmatprep.subr.mxu0 0.0
      %362 = vmatpush2.msra.mxu0 0.0
      %363 = vmatprep.subr.mxu0 0.0
      %364 = vmatpush2.msra.mxu0 0.0
      %365 = vmatprep.subr.mxu0 0.0
      %366 = vmatpush2.msra.mxu0 0.0
      %367 = vmatprep.subr.mxu0 0.0
      %368 = vmatpush2.msra.mxu0 0.0
      %369 = vmatprep.mubr.f32.mxu0 0.0
      %370 = vmatmul.mubr.f32.gmra.mxu0 %v303
      %v371 = vpop.f32.mrf.mxu0
      %v372 = vadd.f32 0.0, %v371
      %v373 = vpop.f32.mrf.mxu0
      %374 = vdwg.mxu0
      %v375 = vadd.f32 %v302, %v372
      %v376 = vxor.u32 %v375, 2147483648
      %v377 = vmul.f32 %v376, 1.442695
      %v378 = vpow.pop %v377
      %v379 = vadd.f32 %v378, 1.0
      %v380 = vrcp.pop %v379
      %v381 = vmul.f32 1.0, %v380
      %v382 = vtanh.pop %v375
      %v383 = vmul.f32 %v381, %v288
      %385 = vrot.lane.b32.xlu0 %v382, 64
      %v386 = vpop.permute.xlu0 %385
      %v388 = vmul.f32 %v381, %v386
      %390 = vrot.lane.b32.xlu0 %v388, 32
      %v391 = vpop.permute.xlu0 %390
      %v393 = vadd.f32 %v383, %v391
      %v394 = vtanh.pop %v393
      %396 = vrot.lane.b32.xlu0 %v394, 64
      %v397 = vpop.permute.xlu0 %396
      %v399 = vmul.f32 %v381, %v397
      %401 = vrot.lane.b32.xlu0 %v399, 32
      %v402 = vpop.permute.xlu0 %401
      %s404 = scalar_lea.vmem %s176, 2
      %405 = vst.msk [vmem:[%s404] sm:$0x3] %vm299, %v402
      %s406 = scalar_lea.vmem %s167, 4
      %v407 = vld [vmem:[%s406] sm:$0x3]
      %v408 = vsel %vm192, %v402, 0
      %410 = vmatprep.subr.mxu0 0.0
      %411 = vmatpush1.msra.mxu0 0.0
      %412 = vmatprep.subr.mxu0 0.0
      %413 = vmatpush1.msra.mxu0 0.0
      %414 = vmatprep.subr.mxu0 0.0
      %415 = vmatpush1.msra.mxu0 0.0
      %416 = vmatprep.subr.mxu0 0.0
      %417 = vmatpush1.msra.mxu0 0.0
      %418 = vmatprep.subr.mxu0 0.0
      %419 = vmatpush1.msra.mxu0 0.0
      %420 = vmatprep.subr.mxu0 0.0
      %421 = vmatpush1.msra.mxu0 0.0
      %422 = vmatprep.subr.mxu0 0.0
      %423 = vmatpush1.msra.mxu0 0.0
      %424 = vmatprep.subr.mxu0 0.0
      %425 = vmatpush1.msra.mxu0 0.0
      %426 = vmatprep.subr.mxu0 0.0
      %427 = vmatpush1.msra.mxu0 0.0
      %428 = vmatprep.subr.mxu0 0.0
      %429 = vmatpush1.msra.mxu0 0.0
      %430 = vmatprep.subr.mxu0 0.0
      %431 = vmatpush1.msra.mxu0 0.0
      %432 = vmatprep.subr.mxu0 0.0
      %433 = vmatpush1.msra.mxu0 0.0
      %434 = vmatprep.subr.mxu0 0.0
      %435 = vmatpush1.msra.mxu0 %v188
      %436 = vmatprep.subr.mxu0 0.0
      %437 = vmatpush1.msra.mxu0 %v187
      %438 = vmatprep.subr.mxu0 0.0
      %439 = vmatpush1.msra.mxu0 %v186
      %440 = vmatprep.subr.mxu0 0.0
      %441 = vmatpush1.msra.mxu0 %v185
      %442 = vmatprep.subr.mxu0 0.0
      %443 = vmatpush2.msra.mxu0 0.0
      %444 = vmatprep.subr.mxu0 0.0
      %445 = vmatpush2.msra.mxu0 0.0
      %446 = vmatprep.subr.mxu0 0.0
      %447 = vmatpush2.msra.mxu0 0.0
      %448 = vmatprep.subr.mxu0 0.0
      %449 = vmatpush2.msra.mxu0 0.0
      %450 = vmatprep.subr.mxu0 0.0
      %451 = vmatpush2.msra.mxu0 0.0
      %452 = vmatprep.subr.mxu0 0.0
      %453 = vmatpush2.msra.mxu0 0.0
      %454 = vmatprep.subr.mxu0 0.0
      %455 = vmatpush2.msra.mxu0 0.0
      %456 = vmatprep.subr.mxu0 0.0
      %457 = vmatpush2.msra.mxu0 0.0
      %458 = vmatprep.subr.mxu0 0.0
      %459 = vmatpush2.msra.mxu0 0.0
      %460 = vmatprep.subr.mxu0 0.0
      %461 = vmatpush2.msra.mxu0 0.0
      %462 = vmatprep.subr.mxu0 0.0
      %463 = vmatpush2.msra.mxu0 0.0
      %464 = vmatprep.subr.mxu0 0.0
      %465 = vmatpush2.msra.mxu0 0.0
      %466 = vmatprep.subr.mxu0 0.0
      %467 = vmatpush2.msra.mxu0 0.0
      %468 = vmatprep.subr.mxu0 0.0
      %469 = vmatpush2.msra.mxu0 0.0
      %470 = vmatprep.subr.mxu0 0.0
      %471 = vmatpush2.msra.mxu0 0.0
      %472 = vmatprep.subr.mxu0 0.0
      %473 = vmatpush2.msra.mxu0 0.0
      %474 = vmatprep.mubr.f32.mxu0 0.0
      %475 = vmatmul.mubr.f32.gmra.mxu0 %v408
      %v476 = vpop.f32.mrf.mxu0
      %v477 = vadd.f32 0.0, %v476
      %v478 = vpop.f32.mrf.mxu0
      %479 = vdwg.mxu0
      %v480 = vadd.f32 %v407, %v477
      %v481 = vxor.u32 %v480, 2147483648
      %v482 = vmul.f32 %v481, 1.442695
      %v483 = vpow.pop %v482
      %v484 = vadd.f32 %v483, 1.0
      %v485 = vrcp.pop %v484
      %v486 = vmul.f32 1.0, %v485
      %v487 = vtanh.pop %v480
      %v488 = vmul.f32 %v486, %v393
      %490 = vrot.lane.b32.xlu0 %v487, 64
      %v491 = vpop.permute.xlu0 %490
      %v493 = vmul.f32 %v486, %v491
      %495 = vrot.lane.b32.xlu0 %v493, 32
      %v496 = vpop.permute.xlu0 %495
      %v498 = vadd.f32 %v488, %v496
      %v499 = vtanh.pop %v498
      %501 = vrot.lane.b32.xlu0 %v499, 64
      %v502 = vpop.permute.xlu0 %501
      %v504 = vmul.f32 %v486, %v502
      %506 = vrot.lane.b32.xlu0 %v504, 32
      %v507 = vpop.permute.xlu0 %506
      %s509 = scalar_lea.vmem %s176, 4
      %510 = vst.msk [vmem:[%s509] sm:$0x3] %vm299, %v507
      %s511 = scalar_lea.vmem %s167, 6
      %v512 = vld [vmem:[%s511] sm:$0x3]
      %v513 = vsel %vm192, %v507, 0
      %515 = vmatprep.subr.mxu0 0.0
      %516 = vmatpush1.msra.mxu0 0.0
      %517 = vmatprep.subr.mxu0 0.0
      %518 = vmatpush1.msra.mxu0 0.0
      %519 = vmatprep.subr.mxu0 0.0
      %520 = vmatpush1.msra.mxu0 0.0
      %521 = vmatprep.subr.mxu0 0.0
      %522 = vmatpush1.msra.mxu0 0.0
      %523 = vmatprep.subr.mxu0 0.0
      %524 = vmatpush1.msra.mxu0 0.0
      %525 = vmatprep.subr.mxu0 0.0
      %526 = vmatpush1.msra.mxu0 0.0
      %527 = vmatprep.subr.mxu0 0.0
      %528 = vmatpush1.msra.mxu0 0.0
      %529 = vmatprep.subr.mxu0 0.0
      %530 = vmatpush1.msra.mxu0 0.0
      %531 = vmatprep.subr.mxu0 0.0
      %532 = vmatpush1.msra.mxu0 0.0
      %533 = vmatprep.subr.mxu0 0.0
      %534 = vmatpush1.msra.mxu0 0.0
      %535 = vmatprep.subr.mxu0 0.0
      %536 = vmatpush1.msra.mxu0 0.0
      %537 = vmatprep.subr.mxu0 0.0
      %538 = vmatpush1.msra.mxu0 0.0
      %539 = vmatprep.subr.mxu0 0.0
      %540 = vmatpush1.msra.mxu0 %v188
      %541 = vmatprep.subr.mxu0 0.0
      %542 = vmatpush1.msra.mxu0 %v187
      %543 = vmatprep.subr.mxu0 0.0
      %544 = vmatpush1.msra.mxu0 %v186
      %545 = vmatprep.subr.mxu0 0.0
      %546 = vmatpush1.msra.mxu0 %v185
      %547 = vmatprep.subr.mxu0 0.0
      %548 = vmatpush2.msra.mxu0 0.0
      %549 = vmatprep.subr.mxu0 0.0
      %550 = vmatpush2.msra.mxu0 0.0
      %551 = vmatprep.subr.mxu0 0.0
      %552 = vmatpush2.msra.mxu0 0.0
      %553 = vmatprep.subr.mxu0 0.0
      %554 = vmatpush2.msra.mxu0 0.0
      %555 = vmatprep.subr.mxu0 0.0
      %556 = vmatpush2.msra.mxu0 0.0
      %557 = vmatprep.subr.mxu0 0.0
      %558 = vmatpush2.msra.mxu0 0.0
      %559 = vmatprep.subr.mxu0 0.0
      %560 = vmatpush2.msra.mxu0 0.0
      %561 = vmatprep.subr.mxu0 0.0
      %562 = vmatpush2.msra.mxu0 0.0
      %563 = vmatprep.subr.mxu0 0.0
      %564 = vmatpush2.msra.mxu0 0.0
      %565 = vmatprep.subr.mxu0 0.0
      %566 = vmatpush2.msra.mxu0 0.0
      %567 = vmatprep.subr.mxu0 0.0
      %568 = vmatpush2.msra.mxu0 0.0
      %569 = vmatprep.subr.mxu0 0.0
      %570 = vmatpush2.msra.mxu0 0.0
      %571 = vmatprep.subr.mxu0 0.0
      %572 = vmatpush2.msra.mxu0 0.0
      %573 = vmatprep.subr.mxu0 0.0
      %574 = vmatpush2.msra.mxu0 0.0
      %575 = vmatprep.subr.mxu0 0.0
      %576 = vmatpush2.msra.mxu0 0.0
      %577 = vmatprep.subr.mxu0 0.0
      %578 = vmatpush2.msra.mxu0 0.0
      %579 = vmatprep.mubr.f32.mxu0 0.0
      %580 = vmatmul.mubr.f32.gmra.mxu0 %v513
      %v581 = vpop.f32.mrf.mxu0
      %v582 = vadd.f32 0.0, %v581
      %v583 = vpop.f32.mrf.mxu0
      %584 = vdwg.mxu0
      %v585 = vadd.f32 %v512, %v582
      %v586 = vxor.u32 %v585, 2147483648
      %v587 = vmul.f32 %v586, 1.442695
      %v588 = vpow.pop %v587
      %v589 = vadd.f32 %v588, 1.0
      %v590 = vrcp.pop %v589
      %v591 = vmul.f32 1.0, %v590
      %v592 = vtanh.pop %v585
      %v593 = vmul.f32 %v591, %v498
      %595 = vrot.lane.b32.xlu0 %v592, 64
      %v596 = vpop.permute.xlu0 %595
      %v598 = vmul.f32 %v591, %v596
      %600 = vrot.lane.b32.xlu0 %v598, 32
      %v601 = vpop.permute.xlu0 %600
      %v603 = vadd.f32 %v593, %v601
      %v604 = vtanh.pop %v603
      %606 = vrot.lane.b32.xlu0 %v604, 64
      %v607 = vpop.permute.xlu0 %606
      %v609 = vmul.f32 %v591, %v607
      %611 = vrot.lane.b32.xlu0 %v609, 32
      %v612 = vpop.permute.xlu0 %611
      %s614 = scalar_lea.vmem %s176, 6
      %615 = vst.msk [vmem:[%s614] sm:$0x3] %vm299, %v612
      %616 = vst.msk [vmem:[#allocation2] sm:$0x3] %vm299, %v612
      %618 = vrot.lane.b32.xlu0 %v603, 96
      %v619 = vpop.permute.xlu0 %618
      %621 = vst.msk [vmem:[#allocation3] sm:$0x3] %vm299, %v619
      %s622 = smul.u32 4, %s18
      %p623 = scmp.lt.s32.totalorder %s622, 7
      %s624 = scalar_select %p623, %s622, 7
      %p625 = scmp.lt.s32.totalorder %s17, 0
      %s626 = scalar_select %p625, %s17, 0
      %s627 = sadd.s32 %s626, %s624
      %s628 = smul.addr %s627, 2
      %s629 = scalar_lea.vmem %s2, %s628
      // Predicated region
      $region33: #{lstm_forward.4} parent=27 // pred_check
        %p630 = pneg %p94
      $region34: #{lstm_forward.4} parent=27 // pred_check_branch
        %632 = sbr.rel (%p630) target = $region36
      $region35: #{lstm_forward.4} parent=27 // pred_region
        %s633 = smul.u32 4, %s18
      $region36: #{lstm_forward.4} parent=27 // pred_fallthru
        _
    $region28: #{lstm_forward.4} parent=5 // pred_fallthru
      _
    %p634 = scmp.le.s32.totalorder 2, %s8
    // Predicated region
    $region37: #{lstm_forward.4} parent=5 // pred_check
      %p635 = pneg %p634
    $region38: #{lstm_forward.4} parent=5 // pred_check_branch
      %637 = sbr.rel (%p635) target = $region40
    $region39: #{lstm_forward.4} parent=5 // pred_region
      %s638 = ssub.s32 %s8, 2
      // Predicated region
      $region41: #{lstm_forward.4} parent=39 // pred_check
        %p639 = pneg %p100
      $region42: #{lstm_forward.4} parent=39 // pred_check_branch
        %641 = sbr.rel (%p639) target = $region44
      $region43: #{lstm_forward.4} parent=39 // pred_region
        %s642 = smul.u32 4, %s20
        %p643 = scmp.lt.s32.totalorder %s642, 7
        %s644 = scalar_select %p643, %s642, 7
        %p645 = scmp.lt.s32.totalorder %s19, 0
        %s646 = scalar_select %p645, %s19, 0
        %s647 = sadd.s32 %s646, %s644
        %s648 = smul.addr %s647, 2
        %s649 = scalar_lea.vmem %s2, %s648
      $region44: #{lstm_forward.4} parent=39 // pred_fallthru
        _
    $region40: #{lstm_forward.4} parent=5 // pred_fallthru
      _
  $region6: #{lstm_forward.4} parent=0 // loop_footer
    %s12 = sadd.s32 1, %s8
  $region7: #{lstm_forward.4} parent=0 // loop_footer_branch
    %7 = sbr.rel target = $region3
  $region8: #{lstm_forward.4} parent=0 // loop_exit
    _

</llo_original>
